<compile_context>
chip_gen: v6e
topology: v6e:2x2x1
jax: 0.10.0
libtpu: 0.0.40
codegen_flags: <defaults>
</compile_context>

<pallas_src>
import functools

import jax
import jax.numpy as jnp
from jax import lax
from jax.experimental import pallas as pl
from jax.experimental.pallas import tpu as pltpu


# ------------------------------ fused kernel --------------------------------


def _fused_var_cross_attn_kernel(
    q_in_ref,    # (tile_n, C)  bf16 query rows for this (batch, n-tile)
    kv_in_ref,   # (S, C)       bf16 flattened key_value rows for this batch
    wq_ref,      # (C, C)       bf16 q_proj weight (softmax scale pre-folded)
    wkv_ref,     # (C, 2C)      bf16 kv_proj weight
    wp_ref,      # (C, C)       bf16 out-proj weight
    bp_ref,      # (1, C)       f32  out-proj bias
    o_ref,       # (tile_n, C)  output rows (original input dtype)
    kvp_ref,     # VMEM scratch (S, 2C) bf16: projected K|V of current batch
    *, num_heads, head_dim, s_chunk,
):
    H, D = num_heads, head_dim
    C = H * D
    S = kv_in_ref.shape[0]
    n_chunks = -(-S // s_chunk)          # static python int

    # KV projection once per batch.  Correctness relies on grid=(B, n_tiles)
    # with the N-tile axis innermost and marked "arbitrary" so this scratch
    # persists unchanged across all N tiles of a batch.  Do not reorder the
    # grid or mark the N axis "parallel".
    @pl.when(pl.program_id(1) == 0)
    def _():
        kvp = jnp.dot(kv_in_ref[...], wkv_ref[...],
                      preferred_element_type=jnp.float32)
        kvp_ref[...] = kvp.astype(kvp_ref.dtype)          # store bf16

    # Q projection (softmax scale already folded into wq host-side).
    q = jnp.dot(q_in_ref[...], wq_ref[...],
                preferred_element_type=jnp.float32)
    q = q.astype(jnp.bfloat16)                            # bf16 MXU operand
    bias = bp_ref[...].astype(jnp.float32)                # (1, C)

    tile_n = q.shape[0]
    single_proj = (D % 128 == 0)         # lane-aligned heads -> one big matmul
    if single_proj:
        head_outs = []
    else:
        acc = jnp.zeros((tile_n, C), dtype=jnp.float32)

    # Per-head attention, statically unrolled (H is small).
    for h in range(H):
        q_h = q[:, h * D:(h + 1) * D]                     # (tile_n, D) bf16

        # Online softmax over S chunks keeps the score slab at
        # (tile_n, s_chunk) regardless of S (softmax stats in f32).
        m_i = jnp.full((tile_n, 1), -jnp.inf, dtype=jnp.float32)
        l_i = jnp.zeros((tile_n, 1), dtype=jnp.float32)
        o_acc = jnp.zeros((tile_n, D), dtype=jnp.float32)
        for c in range(n_chunks):
            c0 = c * s_chunk
            cs = min(s_chunk, S - c0)
            # Slice K/V straight from the scratch ref: no (S, 2C) live value.
            k_c = kvp_ref[c0:c0 + cs, h * D:(h + 1) * D]          # (cs, D) bf16
            v_c = kvp_ref[c0:c0 + cs, C + h * D:C + (h + 1) * D]  # (cs, D) bf16
            # scores: contract D of both operands -> K in stored layout, no .T
            s = lax.dot_general(q_h, k_c, (((1,), (1,)), ((), ())),
                                preferred_element_type=jnp.float32)
            m_new = jnp.maximum(m_i, jnp.max(s, axis=-1, keepdims=True))
            alpha = jnp.exp(m_i - m_new)
            p = jnp.exp(s - m_new)                                 # f32
            l_i = alpha * l_i + jnp.sum(p, axis=-1, keepdims=True)
            o_acc = alpha * o_acc + jnp.dot(p.astype(jnp.bfloat16), v_c,
                                            preferred_element_type=jnp.float32)
            m_i = m_new

        o_h = o_acc * pl.reciprocal(l_i, approx=False)    # exact normalization
        o_h = o_h.astype(jnp.bfloat16)
        if single_proj:
            head_outs.append(o_h)
        else:
            # out = sum_h o_h @ Wp[hD:(h+1)D, :] -> no lane concat of narrow heads
            acc = acc + jnp.dot(o_h, wp_ref[h * D:(h + 1) * D, :],
                                preferred_element_type=jnp.float32)

    if single_proj:
        # D % 128 == 0: lane-aligned concat is free, one C-wide MXU matmul.
        o_cat = jnp.concatenate(head_outs, axis=-1)       # (tile_n, C) bf16
        acc = jnp.dot(o_cat, wp_ref[...], preferred_element_type=jnp.float32)

    o_ref[...] = (acc + bias).astype(o_ref.dtype)


# ------------------------------ module forward ------------------------------


def _pick_tile_n(N):
    # Largest sublane-friendly query tile that divides N (unmasked stores, no
    # exp() on padded garbage rows); fall back to one full tile otherwise.
    for t in (1024, 512, 256, 128, 64, 32, 16, 8):
        if N % t == 0:
            return t
    return N


def _vmem_limit_bytes():
    # Generation-aware VMEM budget (~80% of physical: ~102 MiB on v5e/v6e's
    # 128 MiB, ~51 MiB on v7x's 64 MiB), conservative fallback otherwise.
    try:
        cap = pltpu.get_tpu_info().vmem_capacity_bytes
        return int(cap * 0.8)
    except Exception:
        return 64 * 1024 * 1024


def var_cross_attention(query, key_value, params, num_heads, *, s_chunk=512):
    """
    query:     (B, N, C)
    key_value: (B, V, L, C)
    returns:   (B, N, C) in query.dtype
    """
    B, N, C = query.shape
    _, V, L, _ = key_value.shape
    H = num_heads
    assert C % H == 0
    D = C // H
    S = V * L
    scale = D ** (-0.5)
    out_dtype = query.dtype

    # The module's view/permute gymnastics == plain (V, L) row-major flatten.
    kv_flat = key_value.reshape(B, S, C)

    # bf16 operands into the MXU, f32 accumulation inside the kernel.
    # Softmax scale folded into wq in f32 first, then a single bf16 rounding.
    q_bf = query.astype(jnp.bfloat16)
    kv_bf = kv_flat.astype(jnp.bfloat16)
    wq_bf = (params["wq"].astype(jnp.float32) * scale).astype(jnp.bfloat16)
    wkv_bf = params["wkv"].astype(jnp.bfloat16)
    wp_bf = params["wp"].astype(jnp.bfloat16)
    bp2 = params["bp"].reshape(1, C).astype(jnp.float32)

    tile_n = _pick_tile_n(N)
    n_tiles = -(-N // tile_n)
    s_chunk = max(8, min(s_chunk, S))

    kernel = functools.partial(
        _fused_var_cross_attn_kernel,
        num_heads=H, head_dim=D, s_chunk=s_chunk,
    )

    # Single-buffer operands whose block index never (or rarely) changes:
    # weights/bias are fully resident, kv is re-fetched only once per batch.
    resident = dict(pipeline_mode=pl.Buffered(1))
    grid_spec = pltpu.PrefetchScalarGridSpec(
        num_scalar_prefetch=0,
        grid=(B, n_tiles),                        # N axis innermost + arbitrary
        in_specs=[
            pl.BlockSpec((None, tile_n, C), lambda b, i: (b, i, 0)),        # query tile
            pl.BlockSpec((None, S, C), lambda b, i: (b, 0, 0), **resident), # kv of batch b
            pl.BlockSpec((C, C), lambda b, i: (0, 0), **resident),          # wq * scale
            pl.BlockSpec((C, 2 * C), lambda b, i: (0, 0), **resident),      # wkv
            pl.BlockSpec((C, C), lambda b, i: (0, 0), **resident),          # wp
            pl.BlockSpec((1, C), lambda b, i: (0, 0), **resident),          # proj bias
        ],
        out_specs=pl.BlockSpec((None, tile_n, C), lambda b, i: (b, i, 0)),
        scratch_shapes=[pltpu.VMEM((S, 2 * C), jnp.bfloat16)],
    )

    return pl.pallas_call(
        kernel,
        out_shape=jax.ShapeDtypeStruct((B, N, C), out_dtype),
        grid_spec=grid_spec,
        compiler_params=pltpu.CompilerParams(
            dimension_semantics=("parallel", "arbitrary"),
            vmem_limit_bytes=_vmem_limit_bytes(),
        ),
    )(q_bf, kv_bf, wq_bf, wkv_bf, wp_bf, bp2)


# --------------------------------- reference ---------------------------------


def var_cross_attention_ref(query, key_value, params, num_heads):
    """Pure-JAX f32 mirror of the PyTorch forward (including view/permute chain)."""
    B, N, C = query.shape
    _, V, L, _ = key_value.shape
    H, D = num_heads, C // num_heads
    scale = D ** (-0.5)

    q = (query.reshape(B * N, C) @ params["wq"]).reshape(B, N, H, D)
    q = q.transpose(0, 2, 1, 3).reshape(B * H, N, D)

    kv_view = key_value.reshape(B * L, V, C)                 # torch .view(B*L, V, C)
    kv = (kv_view.reshape(B * L * V, C) @ params["wkv"]).reshape(B * L, V, 2, H, D)
    kv = kv.transpose(2, 0, 3, 1, 4)                         # (2, B*L, H, V, D)
    k, v = kv[0], kv[1]
    k = k.reshape(B, L, H, V, D).transpose(0, 2, 1, 3, 4).reshape(B * H, L * V, D)
    v = v.reshape(B, L, H, V, D).transpose(0, 2, 1, 3, 4).reshape(B * H, L * V, D)

    s = jnp.einsum("bnd,bsd->bns", q, k) * scale
    p = jax.nn.softmax(s, axis=-1)
    x = jnp.einsum("bns,bsd->bnd", p, v)
    x = x.reshape(B, H, N, D).transpose(0, 2, 1, 3).reshape(B * N, C)
    x = x @ params["wp"] + params["bp"]
    return x.reshape(B, N, C)


# ------------------------------------ main -----------------------------------


if __name__ == "__main__":
    B, N, C = 2, 8, 32
    V, L = 2, 8
    num_heads = 4  # head_dim = 8

    key = jax.random.PRNGKey(0)
    kq, kkv, kw1, kw2, kw3, kb3 = jax.random.split(key, 6)

    query = jax.random.normal(kq, (B, N, C), dtype=jnp.float32)
    key_value = jax.random.normal(kkv, (B, V, L, C), dtype=jnp.float32)

    # Weights stored as (in, out) == torch weight.T; qkv_bias=False.
    params = {
        "wq": jax.random.normal(kw1, (C, C), dtype=jnp.float32) * 0.05,
        "wkv": jax.random.normal(kw2, (C, 2 * C), dtype=jnp.float32) * 0.05,
        "wp": jax.random.normal(kw3, (C, C), dtype=jnp.float32) * 0.05,
        "bp": jax.random.normal(kb3, (C,), dtype=jnp.float32) * 0.05,
    }

    out = var_cross_attention(query, key_value, params, num_heads)
    out = jax.block_until_ready(out)

    ref = var_cross_attention_ref(query, key_value, params, num_heads)
    assert out.shape == (B, N, C)
    # bf16 MXU operands with f32 accumulation vs a pure-f32 reference.
    err = float(jnp.max(jnp.abs(out - ref)))
    assert jnp.allclose(out, ref, atol=2e-2, rtol=2e-2), (
        f"Pallas output mismatch vs reference: max abs err = {err}"
    )

    print("KERNEL_OK")
</pallas_src>

<mosaic_0001>
module attributes {stable_mosaic.version = 11 : i64} {
  func.func @_fused_var_cross_attn_kernel(%arg0: i32, %arg1: i32, %arg2: memref<1x8x32xbf16, #tpu.memory_space<vmem>>, %arg3: memref<1x16x32xbf16, #tpu.memory_space<vmem>>, %arg4: memref<32x32xbf16, #tpu.memory_space<vmem>>, %arg5: memref<32x64xbf16, #tpu.memory_space<vmem>>, %arg6: memref<32x32xbf16, #tpu.memory_space<vmem>>, %arg7: memref<1x32xf32, #tpu.memory_space<vmem>>, %arg8: memref<1x8x32xf32, #tpu.memory_space<vmem>>, %arg9: memref<16x64xbf16, #tpu.memory_space<vmem>>) attributes {dimension_semantics = [#tpu.dimension_semantics<parallel>, #tpu.dimension_semantics<arbitrary>], iteration_bounds = array<i64: 2, 1>, scalar_prefetch = 0 : i64, scratch_operands = 1 : i64, tpu.core_type = #tpu.core_type<tc>, window_params = [{transform_indices = @transform_0, window_bounds = array<i64: 1, 8, 32>}, {pipeline_mode = #tpu.pipeline_mode<synchronous>, transform_indices = @transform_1, window_bounds = array<i64: 1, 16, 32>}, {pipeline_mode = #tpu.pipeline_mode<synchronous>, transform_indices = @transform_2, window_bounds = array<i64: 32, 32>}, {pipeline_mode = #tpu.pipeline_mode<synchronous>, transform_indices = @transform_3, window_bounds = array<i64: 32, 64>}, {pipeline_mode = #tpu.pipeline_mode<synchronous>, transform_indices = @transform_4, window_bounds = array<i64: 32, 32>}, {pipeline_mode = #tpu.pipeline_mode<synchronous>, transform_indices = @transform_5, window_bounds = array<i64: 1, 32>}, {transform_indices = @transform_6, window_bounds = array<i64: 1, 8, 32>}]} {
    %c0_i32 = arith.constant 0 : i32
    %0 = arith.cmpi eq, %arg1, %c0_i32 : i32
    %1 = arith.extui %0 : i1 to i32
    %c0_i32_0 = arith.constant 0 : i32
    %2 = arith.cmpi ne, %1, %c0_i32_0 : i32
    scf.if %2 {
      %c0_60 = arith.constant 0 : index
      %c0_61 = arith.constant 0 : index
      %c0_62 = arith.constant 0 : index
      %139 = vector.load %arg3[%c0_60, %c0_61, %c0_62] : memref<1x16x32xbf16, #tpu.memory_space<vmem>>, vector<1x16x32xbf16>
      %140 = vector.shape_cast %139 : vector<1x16x32xbf16> to vector<16x32xbf16>
      %c0_63 = arith.constant 0 : index
      %c0_64 = arith.constant 0 : index
      %141 = vector.load %arg5[%c0_63, %c0_64] : memref<32x64xbf16, #tpu.memory_space<vmem>>, vector<32x64xbf16>
      %cst_65 = arith.constant dense<0.000000e+00> : vector<16x64xf32>
      %142 = tpu.matmul %140, %141, %cst_65 {dimension_numbers = #tpu.dot_dimension_numbers<[1], [0], [0], [1], [0, 0, 1, 1], [], []>} : vector<16x32xbf16>, vector<32x64xbf16>, vector<16x64xf32> -> vector<16x64xf32>
      %143 = arith.truncf %142 : vector<16x64xf32> to vector<16x64xbf16>
      %c0_66 = arith.constant 0 : index
      %c0_67 = arith.constant 0 : index
      %144 = vector.load %arg9[%c0_66, %c0_67] : memref<16x64xbf16, #tpu.memory_space<vmem>>, vector<16x64xbf16>
      tpu.vector_store %arg9[%c0_66, %c0_67], %143 {strides = array<i32>} : memref<16x64xbf16, #tpu.memory_space<vmem>>, vector<16x64xbf16>,
    } else {
    }
    %c0 = arith.constant 0 : index
    %c0_1 = arith.constant 0 : index
    %c0_2 = arith.constant 0 : index
    %3 = vector.load %arg2[%c0, %c0_1, %c0_2] : memref<1x8x32xbf16, #tpu.memory_space<vmem>>, vector<1x8x32xbf16>
    %4 = vector.shape_cast %3 : vector<1x8x32xbf16> to vector<8x32xbf16>
    %c0_3 = arith.constant 0 : index
    %c0_4 = arith.constant 0 : index
    %5 = vector.load %arg4[%c0_3, %c0_4] : memref<32x32xbf16, #tpu.memory_space<vmem>>, vector<32x32xbf16>
    %cst = arith.constant dense<0.000000e+00> : vector<8x32xf32>
    %6 = tpu.matmul %4, %5, %cst {dimension_numbers = #tpu.dot_dimension_numbers<[1], [0], [0], [1], [0, 0, 1, 1], [], []>} : vector<8x32xbf16>, vector<32x32xbf16>, vector<8x32xf32> -> vector<8x32xf32>
    %7 = arith.truncf %6 : vector<8x32xf32> to vector<8x32xbf16>
    %c0_5 = arith.constant 0 : index
    %c0_6 = arith.constant 0 : index
    %8 = vector.load %arg7[%c0_5, %c0_6] : memref<1x32xf32, #tpu.memory_space<vmem>>, vector<1x32xf32>
    %cst_7 = arith.constant 0.000000e+00 : f32
    %9 = vector.broadcast %cst_7 : f32 to vector<8x32xf32>
    %10 = vector.extract_strided_slice %7 {offsets = [0, 0], sizes = [8, 8], strides = [1, 1]} : vector<8x32xbf16> to vector<8x8xbf16>
    %cst_8 = arith.constant 0xFF800000 : f32
    %11 = vector.broadcast %cst_8 : f32 to vector<8x1xf32>
    %cst_9 = arith.constant 0.000000e+00 : f32
    %12 = vector.broadcast %cst_9 : f32 to vector<8x1xf32>
    %cst_10 = arith.constant 0.000000e+00 : f32
    %13 = vector.broadcast %cst_10 : f32 to vector<8x8xf32>
    %c0_11 = arith.constant 0 : index
    %c0_12 = arith.constant 0 : index
    %14 = vector.load %arg9[%c0_11, %c0_12] : memref<16x64xbf16, #tpu.memory_space<vmem>>, vector<16x8xbf16>
    %c0_13 = arith.constant 0 : index
    %c32 = arith.constant 32 : index
    %15 = vector.load %arg9[%c0_13, %c32] : memref<16x64xbf16, #tpu.memory_space<vmem>>, vector<16x8xbf16>
    %cst_14 = arith.constant dense<0.000000e+00> : vector<8x16xf32>
    %16 = tpu.matmul %10, %14, %cst_14 {dimension_numbers = #tpu.dot_dimension_numbers<[1], [1], [0], [0], [0, 0, 1, 0], [], []>} : vector<8x8xbf16>, vector<16x8xbf16>, vector<8x16xf32> -> vector<8x16xf32>
    %cst_15 = arith.constant dense<0xFF800000> : vector<8xf32>
    %17 = vector.multi_reduction <maximumf>, %16, %cst_15 [1] : vector<8x16xf32> to vector<8xf32>
    %18 = vector.shape_cast %17 : vector<8xf32> to vector<8x1xf32>
    %19 = arith.maximumf %11, %18 : vector<8x1xf32>
    %20 = arith.subf %11, %19 : vector<8x1xf32>
    %21 = math.exp %20 : vector<8x1xf32>
    %22 = vector.broadcast %19 : vector<8x1xf32> to vector<8x16xf32>
    %23 = arith.subf %16, %22 : vector<8x16xf32>
    %24 = math.exp %23 : vector<8x16xf32>
    %25 = arith.mulf %21, %12 : vector<8x1xf32>
    %cst_16 = arith.constant dense<0.000000e+00> : vector<8xf32>
    %26 = vector.multi_reduction <add>, %24, %cst_16 [1] : vector<8x16xf32> to vector<8xf32>
    %27 = vector.shape_cast %26 : vector<8xf32> to vector<8x1xf32>
    %28 = arith.addf %25, %27 : vector<8x1xf32>
    %29 = vector.broadcast %21 : vector<8x1xf32> to vector<8x8xf32>
    %30 = arith.mulf %29, %13 : vector<8x8xf32>
    %31 = arith.truncf %24 : vector<8x16xf32> to vector<8x16xbf16>
    %cst_17 = arith.constant dense<0.000000e+00> : vector<8x8xf32>
    %32 = tpu.matmul %31, %15, %cst_17 {dimension_numbers = #tpu.dot_dimension_numbers<[1], [0], [0], [1], [0, 0, 1, 1], [], []>} : vector<8x16xbf16>, vector<16x8xbf16>, vector<8x8xf32> -> vector<8x8xf32>
    %33 = arith.addf %30, %32 : vector<8x8xf32>
    %34 = tpu.reciprocal %28 : vector<8x1xf32> -> vector<8x1xf32>
    %35 = vector.broadcast %34 : vector<8x1xf32> to vector<8x8xf32>
    %36 = arith.mulf %33, %35 : vector<8x8xf32>
    %37 = arith.truncf %36 : vector<8x8xf32> to vector<8x8xbf16>
    %c0_18 = arith.constant 0 : index
    %c0_19 = arith.constant 0 : index
    %38 = vector.load %arg6[%c0_18, %c0_19] : memref<32x32xbf16, #tpu.memory_space<vmem>>, vector<8x32xbf16>
    %cst_20 = arith.constant dense<0.000000e+00> : vector<8x32xf32>
    %39 = tpu.matmul %37, %38, %cst_20 {dimension_numbers = #tpu.dot_dimension_numbers<[1], [0], [0], [1], [0, 0, 1, 1], [], []>} : vector<8x8xbf16>, vector<8x32xbf16>, vector<8x32xf32> -> vector<8x32xf32>
    %40 = arith.addf %9, %39 : vector<8x32xf32>
    %41 = vector.extract_strided_slice %7 {offsets = [0, 8], sizes = [8, 8], strides = [1, 1]} : vector<8x32xbf16> to vector<8x8xbf16>
    %cst_21 = arith.constant 0xFF800000 : f32
    %42 = vector.broadcast %cst_21 : f32 to vector<8x1xf32>
    %cst_22 = arith.constant 0.000000e+00 : f32
    %43 = vector.broadcast %cst_22 : f32 to vector<8x1xf32>
    %cst_23 = arith.constant 0.000000e+00 : f32
    %44 = vector.broadcast %cst_23 : f32 to vector<8x8xf32>
    %c0_24 = arith.constant 0 : index
    %c8 = arith.constant 8 : index
    %45 = vector.load %arg9[%c0_24, %c8] : memref<16x64xbf16, #tpu.memory_space<vmem>>, vector<16x8xbf16>
    %c0_25 = arith.constant 0 : index
    %c40 = arith.constant 40 : index
    %46 = vector.load %arg9[%c0_25, %c40] : memref<16x64xbf16, #tpu.memory_space<vmem>>, vector<16x8xbf16>
    %cst_26 = arith.constant dense<0.000000e+00> : vector<8x16xf32>
    %47 = tpu.matmul %41, %45, %cst_26 {dimension_numbers = #tpu.dot_dimension_numbers<[1], [1], [0], [0], [0, 0, 1, 0], [], []>} : vector<8x8xbf16>, vector<16x8xbf16>, vector<8x16xf32> -> vector<8x16xf32>
    %cst_27 = arith.constant dense<0xFF800000> : vector<8xf32>
    %48 = vector.multi_reduction <maximumf>, %47, %cst_27 [1] : vector<8x16xf32> to vector<8xf32>
    %49 = vector.shape_cast %48 : vector<8xf32> to vector<8x1xf32>
    %50 = arith.maximumf %42, %49 : vector<8x1xf32>
    %51 = arith.subf %42, %50 : vector<8x1xf32>
    %52 = math.exp %51 : vector<8x1xf32>
    %53 = vector.broadcast %50 : vector<8x1xf32> to vector<8x16xf32>
    %54 = arith.subf %47, %53 : vector<8x16xf32>
    %55 = math.exp %54 : vector<8x16xf32>
    %56 = arith.mulf %52, %43 : vector<8x1xf32>
    %cst_28 = arith.constant dense<0.000000e+00> : vector<8xf32>
    %57 = vector.multi_reduction <add>, %55, %cst_28 [1] : vector<8x16xf32> to vector<8xf32>
    %58 = vector.shape_cast %57 : vector<8xf32> to vector<8x1xf32>
    %59 = arith.addf %56, %58 : vector<8x1xf32>
    %60 = vector.broadcast %52 : vector<8x1xf32> to vector<8x8xf32>
    %61 = arith.mulf %60, %44 : vector<8x8xf32>
    %62 = arith.truncf %55 : vector<8x16xf32> to vector<8x16xbf16>
    %cst_29 = arith.constant dense<0.000000e+00> : vector<8x8xf32>
    %63 = tpu.matmul %62, %46, %cst_29 {dimension_numbers = #tpu.dot_dimension_numbers<[1], [0], [0], [1], [0, 0, 1, 1], [], []>} : vector<8x16xbf16>, vector<16x8xbf16>, vector<8x8xf32> -> vector<8x8xf32>
    %64 = arith.addf %61, %63 : vector<8x8xf32>
    %65 = tpu.reciprocal %59 : vector<8x1xf32> -> vector<8x1xf32>
    %66 = vector.broadcast %65 : vector<8x1xf32> to vector<8x8xf32>
    %67 = arith.mulf %64, %66 : vector<8x8xf32>
    %68 = arith.truncf %67 : vector<8x8xf32> to vector<8x8xbf16>
    %c8_30 = arith.constant 8 : index
    %c0_31 = arith.constant 0 : index
    %69 = vector.load %arg6[%c8_30, %c0_31] : memref<32x32xbf16, #tpu.memory_space<vmem>>, vector<8x32xbf16>
    %cst_32 = arith.constant dense<0.000000e+00> : vector<8x32xf32>
    %70 = tpu.matmul %68, %69, %cst_32 {dimension_numbers = #tpu.dot_dimension_numbers<[1], [0], [0], [1], [0, 0, 1, 1], [], []>} : vector<8x8xbf16>, vector<8x32xbf16>, vector<8x32xf32> -> vector<8x32xf32>
    %71 = arith.addf %40, %70 : vector<8x32xf32>
    %72 = vector.extract_strided_slice %7 {offsets = [0, 16], sizes = [8, 8], strides = [1, 1]} : vector<8x32xbf16> to vector<8x8xbf16>
    %cst_33 = arith.constant 0xFF800000 : f32
    %73 = vector.broadcast %cst_33 : f32 to vector<8x1xf32>
    %cst_34 = arith.constant 0.000000e+00 : f32
    %74 = vector.broadcast %cst_34 : f32 to vector<8x1xf32>
    %cst_35 = arith.constant 0.000000e+00 : f32
    %75 = vector.broadcast %cst_35 : f32 to vector<8x8xf32>
    %c0_36 = arith.constant 0 : index
    %c16 = arith.constant 16 : index
    %76 = vector.load %arg9[%c0_36, %c16] : memref<16x64xbf16, #tpu.memory_space<vmem>>, vector<16x8xbf16>
    %c0_37 = arith.constant 0 : index
    %c48 = arith.constant 48 : index
    %77 = vector.load %arg9[%c0_37, %c48] : memref<16x64xbf16, #tpu.memory_space<vmem>>, vector<16x8xbf16>
    %cst_38 = arith.constant dense<0.000000e+00> : vector<8x16xf32>
    %78 = tpu.matmul %72, %76, %cst_38 {dimension_numbers = #tpu.dot_dimension_numbers<[1], [1], [0], [0], [0, 0, 1, 0], [], []>} : vector<8x8xbf16>, vector<16x8xbf16>, vector<8x16xf32> -> vector<8x16xf32>
    %cst_39 = arith.constant dense<0xFF800000> : vector<8xf32>
    %79 = vector.multi_reduction <maximumf>, %78, %cst_39 [1] : vector<8x16xf32> to vector<8xf32>
    %80 = vector.shape_cast %79 : vector<8xf32> to vector<8x1xf32>
    %81 = arith.maximumf %73, %80 : vector<8x1xf32>
    %82 = arith.subf %73, %81 : vector<8x1xf32>
    %83 = math.exp %82 : vector<8x1xf32>
    %84 = vector.broadcast %81 : vector<8x1xf32> to vector<8x16xf32>
    %85 = arith.subf %78, %84 : vector<8x16xf32>
    %86 = math.exp %85 : vector<8x16xf32>
    %87 = arith.mulf %83, %74 : vector<8x1xf32>
    %cst_40 = arith.constant dense<0.000000e+00> : vector<8xf32>
    %88 = vector.multi_reduction <add>, %86, %cst_40 [1] : vector<8x16xf32> to vector<8xf32>
    %89 = vector.shape_cast %88 : vector<8xf32> to vector<8x1xf32>
    %90 = arith.addf %87, %89 : vector<8x1xf32>
    %91 = vector.broadcast %83 : vector<8x1xf32> to vector<8x8xf32>
    %92 = arith.mulf %91, %75 : vector<8x8xf32>
    %93 = arith.truncf %86 : vector<8x16xf32> to vector<8x16xbf16>
    %cst_41 = arith.constant dense<0.000000e+00> : vector<8x8xf32>
    %94 = tpu.matmul %93, %77, %cst_41 {dimension_numbers = #tpu.dot_dimension_numbers<[1], [0], [0], [1], [0, 0, 1, 1], [], []>} : vector<8x16xbf16>, vector<16x8xbf16>, vector<8x8xf32> -> vector<8x8xf32>
    %95 = arith.addf %92, %94 : vector<8x8xf32>
    %96 = tpu.reciprocal %90 : vector<8x1xf32> -> vector<8x1xf32>
    %97 = vector.broadcast %96 : vector<8x1xf32> to vector<8x8xf32>
    %98 = arith.mulf %95, %97 : vector<8x8xf32>
    %99 = arith.truncf %98 : vector<8x8xf32> to vector<8x8xbf16>
    %c16_42 = arith.constant 16 : index
    %c0_43 = arith.constant 0 : index
    %100 = vector.load %arg6[%c16_42, %c0_43] : memref<32x32xbf16, #tpu.memory_space<vmem>>, vector<8x32xbf16>
    %cst_44 = arith.constant dense<0.000000e+00> : vector<8x32xf32>
    %101 = tpu.matmul %99, %100, %cst_44 {dimension_numbers = #tpu.dot_dimension_numbers<[1], [0], [0], [1], [0, 0, 1, 1], [], []>} : vector<8x8xbf16>, vector<8x32xbf16>, vector<8x32xf32> -> vector<8x32xf32>
    %102 = arith.addf %71, %101 : vector<8x32xf32>
    %103 = vector.extract_strided_slice %7 {offsets = [0, 24], sizes = [8, 8], strides = [1, 1]} : vector<8x32xbf16> to vector<8x8xbf16>
    %cst_45 = arith.constant 0xFF800000 : f32
    %104 = vector.broadcast %cst_45 : f32 to vector<8x1xf32>
    %cst_46 = arith.constant 0.000000e+00 : f32
    %105 = vector.broadcast %cst_46 : f32 to vector<8x1xf32>
    %cst_47 = arith.constant 0.000000e+00 : f32
    %106 = vector.broadcast %cst_47 : f32 to vector<8x8xf32>
    %c0_48 = arith.constant 0 : index
    %c24 = arith.constant 24 : index
    %107 = vector.load %arg9[%c0_48, %c24] : memref<16x64xbf16, #tpu.memory_space<vmem>>, vector<16x8xbf16>
    %c0_49 = arith.constant 0 : index
    %c56 = arith.constant 56 : index
    %108 = vector.load %arg9[%c0_49, %c56] : memref<16x64xbf16, #tpu.memory_space<vmem>>, vector<16x8xbf16>
    %cst_50 = arith.constant dense<0.000000e+00> : vector<8x16xf32>
    %109 = tpu.matmul %103, %107, %cst_50 {dimension_numbers = #tpu.dot_dimension_numbers<[1], [1], [0], [0], [0, 0, 1, 0], [], []>} : vector<8x8xbf16>, vector<16x8xbf16>, vector<8x16xf32> -> vector<8x16xf32>
    %cst_51 = arith.constant dense<0xFF800000> : vector<8xf32>
    %110 = vector.multi_reduction <maximumf>, %109, %cst_51 [1] : vector<8x16xf32> to vector<8xf32>
    %111 = vector.shape_cast %110 : vector<8xf32> to vector<8x1xf32>
    %112 = arith.maximumf %104, %111 : vector<8x1xf32>
    %113 = arith.subf %104, %112 : vector<8x1xf32>
    %114 = math.exp %113 : vector<8x1xf32>
    %115 = vector.broadcast %112 : vector<8x1xf32> to vector<8x16xf32>
    %116 = arith.subf %109, %115 : vector<8x16xf32>
    %117 = math.exp %116 : vector<8x16xf32>
    %118 = arith.mulf %114, %105 : vector<8x1xf32>
    %cst_52 = arith.constant dense<0.000000e+00> : vector<8xf32>
    %119 = vector.multi_reduction <add>, %117, %cst_52 [1] : vector<8x16xf32> to vector<8xf32>
    %120 = vector.shape_cast %119 : vector<8xf32> to vector<8x1xf32>
    %121 = arith.addf %118, %120 : vector<8x1xf32>
    %122 = vector.broadcast %114 : vector<8x1xf32> to vector<8x8xf32>
    %123 = arith.mulf %122, %106 : vector<8x8xf32>
    %124 = arith.truncf %117 : vector<8x16xf32> to vector<8x16xbf16>
    %cst_53 = arith.constant dense<0.000000e+00> : vector<8x8xf32>
    %125 = tpu.matmul %124, %108, %cst_53 {dimension_numbers = #tpu.dot_dimension_numbers<[1], [0], [0], [1], [0, 0, 1, 1], [], []>} : vector<8x16xbf16>, vector<16x8xbf16>, vector<8x8xf32> -> vector<8x8xf32>
    %126 = arith.addf %123, %125 : vector<8x8xf32>
    %127 = tpu.reciprocal %121 : vector<8x1xf32> -> vector<8x1xf32>
    %128 = vector.broadcast %127 : vector<8x1xf32> to vector<8x8xf32>
    %129 = arith.mulf %126, %128 : vector<8x8xf32>
    %130 = arith.truncf %129 : vector<8x8xf32> to vector<8x8xbf16>
    %c24_54 = arith.constant 24 : index
    %c0_55 = arith.constant 0 : index
    %131 = vector.load %arg6[%c24_54, %c0_55] : memref<32x32xbf16, #tpu.memory_space<vmem>>, vector<8x32xbf16>
    %cst_56 = arith.constant dense<0.000000e+00> : vector<8x32xf32>
    %132 = tpu.matmul %130, %131, %cst_56 {dimension_numbers = #tpu.dot_dimension_numbers<[1], [0], [0], [1], [0, 0, 1, 1], [], []>} : vector<8x8xbf16>, vector<8x32xbf16>, vector<8x32xf32> -> vector<8x32xf32>
    %133 = arith.addf %102, %132 : vector<8x32xf32>
    %134 = vector.broadcast %8 : vector<1x32xf32> to vector<8x32xf32>
    %135 = arith.addf %133, %134 : vector<8x32xf32>
    %c0_57 = arith.constant 0 : index
    %c0_58 = arith.constant 0 : index
    %c0_59 = arith.constant 0 : index
    %136 = vector.load %arg8[%c0_57, %c0_58, %c0_59] : memref<1x8x32xf32, #tpu.memory_space<vmem>>, vector<1x8x32xf32>
    %137 = vector.shape_cast %136 : vector<1x8x32xf32> to vector<8x32xf32>
    %138 = vector.shape_cast %135 : vector<8x32xf32> to vector<1x8x32xf32>
    tpu.vector_store %arg8[%c0_57, %c0_58, %c0_59], %138 {strides = array<i32>} : memref<1x8x32xf32, #tpu.memory_space<vmem>>, vector<1x8x32xf32>,
    return
  }
  func.func @transform_0(%arg0: i32, %arg1: i32) -> (i32, i32, i32) {
    %c0_i32 = arith.constant 0 : i32
    %c0_i32_0 = arith.constant 0 : i32
    return %arg0, %arg1, %c0_i32 : i32, i32, i32
  }
  func.func @transform_1(%arg0: i32, %arg1: i32) -> (i32, i32, i32) {
    %c0_i32 = arith.constant 0 : i32
    %c0_i32_0 = arith.constant 0 : i32
    %c0_i32_1 = arith.constant 0 : i32
    return %arg0, %c0_i32, %c0_i32_0 : i32, i32, i32
  }
  func.func @transform_2(%arg0: i32, %arg1: i32) -> (i32, i32) {
    %c0_i32 = arith.constant 0 : i32
    %c0_i32_0 = arith.constant 0 : i32
    %c0_i32_1 = arith.constant 0 : i32
    return %c0_i32, %c0_i32_0 : i32, i32
  }
  func.func @transform_3(%arg0: i32, %arg1: i32) -> (i32, i32) {
    %c0_i32 = arith.constant 0 : i32
    %c0_i32_0 = arith.constant 0 : i32
    %c0_i32_1 = arith.constant 0 : i32
    return %c0_i32, %c0_i32_0 : i32, i32
  }
  func.func @transform_4(%arg0: i32, %arg1: i32) -> (i32, i32) {
    %c0_i32 = arith.constant 0 : i32
    %c0_i32_0 = arith.constant 0 : i32
    %c0_i32_1 = arith.constant 0 : i32
    return %c0_i32, %c0_i32_0 : i32, i32
  }
  func.func @transform_5(%arg0: i32, %arg1: i32) -> (i32, i32) {
    %c0_i32 = arith.constant 0 : i32
    %c0_i32_0 = arith.constant 0 : i32
    %c0_i32_1 = arith.constant 0 : i32
    return %c0_i32, %c0_i32_0 : i32, i32
  }
  func.func @transform_6(%arg0: i32, %arg1: i32) -> (i32, i32, i32) {
    %c0_i32 = arith.constant 0 : i32
    %c0_i32_0 = arith.constant 0 : i32
    return %arg0, %arg1, %c0_i32 : i32, i32, i32
  }
}

</mosaic_0001>

<llo_original>
// kernel: tpu_custom_call.1
$region0: #{tpu_custom_call.1}
  #allocation0 [shape = 'u32[]', space=smem, size = 0x4, offset = 0x4, fixed_abs, tag = 'smem constant byte address 0x4 - core index']
  #allocation1 [shape = 'u32[144,128]{1,0:T(1,128)}', space=vmem, size = 0x12000, scoped, tag = 'internal scratch']
  #allocation2 [shape = 'bf16[16,64]{1,0:T(8,128)(2,1)}', space=vmem, size = 0x1000, scoped, tag = 'scratch operand']
  %s0 = inlined_call_operand.hbm [shape: bf16[2,8,32], index: 0, kind: input, shape index: {}]
  %s1 = inlined_call_operand.hbm [shape: bf16[2,16,32], index: 1, kind: input, shape index: {}]
  %s2 = inlined_call_operand.hbm [shape: bf16[32,32], index: 2, kind: input, shape index: {}]
  %s3 = inlined_call_operand.hbm [shape: bf16[32,64], index: 3, kind: input, shape index: {}]
  %s4 = inlined_call_operand.hbm [shape: bf16[32,32], index: 4, kind: input, shape index: {}]
  %s5 = inlined_call_operand.vmem [shape: f32[1,32], index: 5, kind: input, shape index: {}]
  %s6 = inlined_call_operand.hbm [shape: f32[2,8,32], index: 6, kind: output, shape index: {}]
  %s7 = sld [smem:[#allocation0]]
  $region81: #{tpu_custom_call.1} parent=0
    _
  %s9 = ssub.s32 1, %s7
  %s10 = scalar_select 0, %s9, %s7
  $region1: #{tpu_custom_call.1} parent=0
    #allocation3 [shape = 'u8[4096]{0}', space=vmem, size = 0x1000, scoped, tag = 'input window, operand 0']
    #allocation4 [shape = 's32[2]{0}', space=sflag, size = 0x8, scoped, tag = 'scoped memory for tpu_custom_call.1']
    #allocation5 [shape = 's32[2]{0}', space=sflag, size = 0x8, scoped, tag = 'scoped memory for tpu_custom_call.1']
    #allocation6 [shape = 'u8[4096]{0}', space=vmem, size = 0x1000, scoped, tag = 'input window, operand 1, single buffered']
    #allocation7 [shape = 's32[1]{0}', space=sflag, size = 0x4, scoped, tag = 'scoped memory for tpu_custom_call.1']
    #allocation8 [shape = 'u8[8192]{0}', space=vmem, size = 0x2000, scoped, tag = 'input window, operand 2, single buffered']
    #allocation9 [shape = 'u8[8192]{0}', space=vmem, size = 0x2000, scoped, tag = 'input window, operand 3, single buffered']
    #allocation10 [shape = 's32[1]{0}', space=sflag, size = 0x4, scoped, tag = 'scoped memory for tpu_custom_call.1']
    #allocation11 [shape = 'u8[8192]{0}', space=vmem, size = 0x2000, scoped, tag = 'input window, operand 4, single buffered']
    #allocation12 [shape = 'u8[8192]{0}', space=vmem, size = 0x2000, scoped, tag = 'output window, operand 0']
    %11 = vsyncpa [#allocation4], 0
    %s12 = scalar_lea.sflag [#allocation4], 1
    %13 = vsyncpa %s12, 0
    %14 = vsyncpa [#allocation7], 0
    %15 = vsyncpa [#allocation10], 0
    %16 = vsyncpa [#allocation5], 0
    %s17 = scalar_lea.sflag [#allocation5], 1
    %18 = vsyncpa %s17, 0
    loop: start=0, step=1, limit=4
    $region2: #{tpu_custom_call.1} parent=1 // loop_pre_header
      _
    $region3: #{tpu_custom_call.1} parent=1 // loop_header
      %s20 = sphi 0, %s24
      %p21 = scmp.ge.s32.totalorder %s20, 4
      %s27 = sphi 0, %s39
      %s28 = sphi 0, %s35
      %s29 = sphi 0, %s27
      %s30 = sphi 0, %s28
      %s31 = sphi 0, %s29
      %s32 = sphi 0, %s30
      %s44 = sphi 0, %s46
      %s47 = sphi 0, %s44
      %s48 = sphi 0, %s47
      %s64 = sphi 0, %s48
      %s70 = sphi 0, %s72
      %s73 = sphi 0, %s70
      %s74 = sphi 0, %s73
      %s90 = sphi 0, %s74
      %s94 = sphi 0, %s94
      %s96 = sphi 0, %s94
      %s97 = sphi 0, %s96
      %s111 = sphi 0, %s97
      %s115 = sphi 0, %s115
      %s117 = sphi 0, %s115
      %s118 = sphi 0, %s117
      %s132 = sphi 0, %s118
      %s136 = sphi 0, %s136
      %s138 = sphi 0, %s136
      %s139 = sphi 0, %s138
      %s153 = sphi 0, %s139
      %s157 = sphi 0, %s157
      %s159 = sphi 0, %s157
      %s160 = sphi 0, %s159
      %s174 = sphi 0, %s160
      %s182 = sphi 0, %s184
      %s185 = sphi 0, %s182
      %s186 = sphi 0, %s185
      %s202 = sphi 0, %s186
    $region4: #{tpu_custom_call.1} parent=1 // loop_header_branch
      %23 = sbr.rel (%p21) target = $region8
    $region5: #{tpu_custom_call.1} parent=1 // loop_body
      %s25 = ssub.s32 %s20, 1
      %s26 = ssub.s32 %s20, 2
      %s33 = sadd.s32 1, %s28
      %p34 = scmp.ge.s32.totalorder %s33, 1
      %s35 = scalar_select %p34, 0, %s33
      %s36 = sadd.s32 1, %s27
      %s37 = scalar_select %p34, %s36, %s27
      %p38 = scmp.ge.s32.totalorder %s37, 2
      %s39 = scalar_select %p38, 0, %s37
      %s40 = ssub.s32 %s27, %s39
      %s41 = ssub.s32 %s28, %s35
      %s42 = sor.u32 %s40, %s41
      %p43 = scmp.eq.s32.totalorder %s42, 0
      %s45 = sadd.s32 %s44, 1
      %s46 = scalar_select %p43, %s44, %s45
      %p49 = pneg %p43
      %p50 = scmp.eq.s32.totalorder %s20, 1
      %p51 = por %p49, %p50
      %p52 = scmp.ne.s32.totalorder %s44, %s47
      %p53 = scmp.eq.s32.totalorder %s20, 0
      %p54 = por %p52, %p53
      %p55 = scmp.ne.s32.totalorder %s44, %s47
      %p56 = scmp.eq.s32.totalorder %s25, 1
      %p57 = por %p55, %p56
      %p58 = scmp.ne.s32.totalorder %s47, %s48
      %p59 = scmp.eq.s32.totalorder %s25, 0
      %p60 = por %p58, %p59
      %p61 = scmp.ne.s32.totalorder %s47, %s48
      %p62 = scmp.eq.s32.totalorder %s26, 1
      %p63 = por %p61, %p62
      %p65 = scmp.ne.s32.totalorder %s48, %s64
      %p66 = scmp.eq.s32.totalorder %s26, 0
      %p67 = por %p65, %p66
      %s68 = ssub.s32 %s27, %s39
      %p69 = scmp.eq.s32.totalorder %s68, 0
      %s71 = sadd.s32 %s70, 1
      %s72 = scalar_select %p69, %s70, %s71
      %p75 = pneg %p69
      %p76 = scmp.eq.s32.totalorder %s20, 1
      %p77 = por %p75, %p76
      %p78 = scmp.ne.s32.totalorder %s70, %s73
      %p79 = scmp.eq.s32.totalorder %s20, 0
      %p80 = por %p78, %p79
      %p81 = scmp.ne.s32.totalorder %s70, %s73
      %p82 = scmp.eq.s32.totalorder %s25, 1
      %p83 = por %p81, %p82
      %p84 = scmp.ne.s32.totalorder %s73, %s74
      %p85 = scmp.eq.s32.totalorder %s25, 0
      %p86 = por %p84, %p85
      %p87 = scmp.ne.s32.totalorder %s73, %s74
      %p88 = scmp.eq.s32.totalorder %s26, 1
      %p89 = por %p87, %p88
      %p91 = scmp.ne.s32.totalorder %s74, %s90
      %p92 = scmp.eq.s32.totalorder %s26, 0
      %p93 = por %p91, %p92
      %s95 = sadd.s32 %s94, 1
      %p98 = scmp.eq.s32.totalorder %s20, 1
      %p99 = scmp.ne.s32.totalorder %s94, %s96
      %p100 = scmp.eq.s32.totalorder %s20, 0
      %p101 = por %p99, %p100
      %p102 = scmp.ne.s32.totalorder %s94, %s96
      %p103 = scmp.eq.s32.totalorder %s25, 1
      %p104 = por %p102, %p103
      %p105 = scmp.ne.s32.totalorder %s96, %s97
      %p106 = scmp.eq.s32.totalorder %s25, 0
      %p107 = por %p105, %p106
      %p108 = scmp.ne.s32.totalorder %s96, %s97
      %p109 = scmp.eq.s32.totalorder %s26, 1
      %p110 = por %p108, %p109
      %p112 = scmp.ne.s32.totalorder %s97, %s111
      %p113 = scmp.eq.s32.totalorder %s26, 0
      %p114 = por %p112, %p113
      %s116 = sadd.s32 %s115, 1
      %p119 = scmp.eq.s32.totalorder %s20, 1
      %p120 = scmp.ne.s32.totalorder %s115, %s117
      %p121 = scmp.eq.s32.totalorder %s20, 0
      %p122 = por %p120, %p121
      %p123 = scmp.ne.s32.totalorder %s115, %s117
      %p124 = scmp.eq.s32.totalorder %s25, 1
      %p125 = por %p123, %p124
      %p126 = scmp.ne.s32.totalorder %s117, %s118
      %p127 = scmp.eq.s32.totalorder %s25, 0
      %p128 = por %p126, %p127
      %p129 = scmp.ne.s32.totalorder %s117, %s118
      %p130 = scmp.eq.s32.totalorder %s26, 1
      %p131 = por %p129, %p130
      %p133 = scmp.ne.s32.totalorder %s118, %s132
      %p134 = scmp.eq.s32.totalorder %s26, 0
      %p135 = por %p133, %p134
      %s137 = sadd.s32 %s136, 1
      %p140 = scmp.eq.s32.totalorder %s20, 1
      %p141 = scmp.ne.s32.totalorder %s136, %s138
      %p142 = scmp.eq.s32.totalorder %s20, 0
      %p143 = por %p141, %p142
      %p144 = scmp.ne.s32.totalorder %s136, %s138
      %p145 = scmp.eq.s32.totalorder %s25, 1
      %p146 = por %p144, %p145
      %p147 = scmp.ne.s32.totalorder %s138, %s139
      %p148 = scmp.eq.s32.totalorder %s25, 0
      %p149 = por %p147, %p148
      %p150 = scmp.ne.s32.totalorder %s138, %s139
      %p151 = scmp.eq.s32.totalorder %s26, 1
      %p152 = por %p150, %p151
      %p154 = scmp.ne.s32.totalorder %s139, %s153
      %p155 = scmp.eq.s32.totalorder %s26, 0
      %p156 = por %p154, %p155
      %s158 = sadd.s32 %s157, 1
      %p161 = scmp.eq.s32.totalorder %s20, 1
      %p162 = scmp.ne.s32.totalorder %s157, %s159
      %p163 = scmp.eq.s32.totalorder %s20, 0
      %p164 = por %p162, %p163
      %p165 = scmp.ne.s32.totalorder %s157, %s159
      %p166 = scmp.eq.s32.totalorder %s25, 1
      %p167 = por %p165, %p166
      %p168 = scmp.ne.s32.totalorder %s159, %s160
      %p169 = scmp.eq.s32.totalorder %s25, 0
      %p170 = por %p168, %p169
      %p171 = scmp.ne.s32.totalorder %s159, %s160
      %p172 = scmp.eq.s32.totalorder %s26, 1
      %p173 = por %p171, %p172
      %p175 = scmp.ne.s32.totalorder %s160, %s174
      %p176 = scmp.eq.s32.totalorder %s26, 0
      %p177 = por %p175, %p176
      %s178 = ssub.s32 %s27, %s39
      %s179 = ssub.s32 %s28, %s35
      %s180 = sor.u32 %s178, %s179
      %p181 = scmp.eq.s32.totalorder %s180, 0
      %s183 = sadd.s32 %s182, 1
      %s184 = scalar_select %p181, %s182, %s183
      %p187 = pneg %p181
      %p188 = scmp.eq.s32.totalorder %s20, 1
      %p189 = por %p187, %p188
      %p190 = scmp.ne.s32.totalorder %s182, %s185
      %p191 = scmp.eq.s32.totalorder %s20, 0
      %p192 = por %p190, %p191
      %p193 = scmp.ne.s32.totalorder %s182, %s185
      %p194 = scmp.eq.s32.totalorder %s25, 1
      %p195 = por %p193, %p194
      %p196 = scmp.ne.s32.totalorder %s185, %s186
      %p197 = scmp.eq.s32.totalorder %s25, 0
      %p198 = por %p196, %p197
      %p199 = scmp.ne.s32.totalorder %s185, %s186
      %p200 = scmp.eq.s32.totalorder %s26, 1
      %p201 = por %p199, %p200
      %p203 = scmp.ne.s32.totalorder %s186, %s202
      %p204 = scmp.eq.s32.totalorder %s26, 0
      %p205 = por %p203, %p204
      %p206 = scmp.le.s32.totalorder 1, %s20
      %p207 = scmp.lt.s32.totalorder %s20, 3
      %p208 = pnand %p206, %p207
      %p209 = pneg %p208
      // Predicated region
      $region9: #{tpu_custom_call.1} parent=5 // pred_check
        _
      $region10: #{tpu_custom_call.1} parent=5 // pred_check_branch
        %211 = sbr.rel (%p208) target = $region12
      $region11: #{tpu_custom_call.1} parent=5 // pred_region
        %s212 = ssub.s32 %s20, 1
        // Predicated region
        $region13: #{tpu_custom_call.1} parent=11 // pred_check
          %p213 = pneg %p86
        $region14: #{tpu_custom_call.1} parent=11 // pred_check_branch
          %215 = sbr.rel (%p213) target = $region16
        $region15: #{tpu_custom_call.1} parent=11 // pred_region
          %s217 = ssub.s32 128, 128
          %218 = vsyncadd [#allocation7], %s217
          %s219 = smul.addr %s29, 2
          %s220 = smul.addr %s219, 64
          %s221 = scalar_lea.hbm %s1, %s220
          %s222 = sshll.u32 [#allocation6], 4
          %s223 = int_to_ptr.vmem [resolvable:$true] %s222
          %228 = dma.hbm_to_vmem [thread:$0]  %s221, 128, %s223, [#allocation7], 64, 64, 4
        $region16: #{tpu_custom_call.1} parent=11 // pred_fallthru
          _
        // Predicated region
        $region17: #{tpu_custom_call.1} parent=11 // pred_check
          %p229 = pneg %p107
        $region18: #{tpu_custom_call.1} parent=11 // pred_check_branch
          %231 = sbr.rel (%p229) target = $region20
        $region19: #{tpu_custom_call.1} parent=11 // pred_region
          %s233 = ssub.s32 256, 256
          %234 = vsyncadd [#allocation7], %s233
          %s235 = sshll.u32 [#allocation8], 4
          %s236 = int_to_ptr.vmem [resolvable:$true] %s235
          %241 = dma.hbm_to_vmem [thread:$0]  %s2, 256, %s236, [#allocation7], 64, 64, 4
        $region20: #{tpu_custom_call.1} parent=11 // pred_fallthru
          _
        // Predicated region
        $region21: #{tpu_custom_call.1} parent=11 // pred_check
          %p242 = pneg %p128
        $region22: #{tpu_custom_call.1} parent=11 // pred_check_branch
          %244 = sbr.rel (%p242) target = $region24
        $region23: #{tpu_custom_call.1} parent=11 // pred_region
          %s246 = ssub.s32 256, 256
          %247 = vsyncadd [#allocation10], %s246
          %s248 = sshll.u32 [#allocation9], 4
          %s249 = int_to_ptr.vmem [resolvable:$true] %s248
          %254 = dma.hbm_to_vmem [thread:$0]  %s3, 256, %s249, [#allocation10], 64, 64, 4
        $region24: #{tpu_custom_call.1} parent=11 // pred_fallthru
          _
        // Predicated region
        $region25: #{tpu_custom_call.1} parent=11 // pred_check
          %p255 = pneg %p149
        $region26: #{tpu_custom_call.1} parent=11 // pred_check_branch
          %257 = sbr.rel (%p255) target = $region28
        $region27: #{tpu_custom_call.1} parent=11 // pred_region
          %s259 = ssub.s32 256, 256
          %260 = vsyncadd [#allocation10], %s259
          %s261 = sshll.u32 [#allocation11], 4
          %s262 = int_to_ptr.vmem [resolvable:$true] %s261
          %267 = dma.hbm_to_vmem [thread:$0]  %s4, 256, %s262, [#allocation10], 64, 64, 4
        $region28: #{tpu_custom_call.1} parent=11 // pred_fallthru
          _
        // Predicated region
        $region29: #{tpu_custom_call.1} parent=11 // pred_check
          %p268 = pneg %p170
        $region30: #{tpu_custom_call.1} parent=11 // pred_check_branch
          %270 = sbr.rel (%p268) target = $region32
        $region31: #{tpu_custom_call.1} parent=11 // pred_region
          _
        $region32: #{tpu_custom_call.1} parent=11 // pred_fallthru
          _
      $region12: #{tpu_custom_call.1} parent=5 // pred_fallthru
        _
      %p271 = scmp.lt.s32.totalorder %s20, 2
      // Predicated region
      $region33: #{tpu_custom_call.1} parent=5 // pred_check
        %p272 = pneg %p271
      $region34: #{tpu_custom_call.1} parent=5 // pred_check_branch
        %274 = sbr.rel (%p272) target = $region36
      $region35: #{tpu_custom_call.1} parent=5 // pred_region
        // Predicated region
        $region37: #{tpu_custom_call.1} parent=35 // pred_check
          %p275 = pneg %p54
        $region38: #{tpu_custom_call.1} parent=35 // pred_check_branch
          %277 = sbr.rel (%p275) target = $region40
        $region39: #{tpu_custom_call.1} parent=35 // pred_region
          %s278 = sand.u32 %s44, 1
          %s279 = scalar_lea.sflag [#allocation4], %s278
          %s280 = sand.u32 %s44, 1
          %s281 = smul.addr %s280, 4
          %s282 = scalar_lea.vmem [#allocation3], %s281
          %s284 = ssub.s32 64, 64
          %285 = vsyncadd %s279, %s284
          %s286 = sadd.s32 %s28, %s27
          %s287 = smul.addr %s286, 64
          %s288 = scalar_lea.hbm %s0, %s287
          %s290 = sshll.u32 %s282, 4
          %s291 = int_to_ptr.vmem [resolvable:$true] %s290
          %293 = dma.hbm_to_vmem [thread:$0]  %s288, 64, %s291, %s279
        $region40: #{tpu_custom_call.1} parent=35 // pred_fallthru
          _
      $region36: #{tpu_custom_call.1} parent=5 // pred_fallthru
        _
      %p294 = scmp.le.s32.totalorder 1, %s20
      %p295 = scmp.lt.s32.totalorder %s20, 3
      %p296 = pnand %p294, %p295
      %p297 = pneg %p296
      // Predicated region
      $region41: #{tpu_custom_call.1} parent=5 // pred_check
        _
      $region42: #{tpu_custom_call.1} parent=5 // pred_check_branch
        %299 = sbr.rel (%p296) target = $region44
      $region43: #{tpu_custom_call.1} parent=5 // pred_region
        %s300 = ssub.s32 %s20, 1
        %s301 = sand.u32 %s47, 1
        %s302 = scalar_lea.sflag [#allocation4], %s301
        %s303 = sand.u32 %s47, 1
        %s304 = smul.addr %s303, 4
        %s305 = scalar_lea.vmem [#allocation3], %s304
        // Predicated region
        $region45: #{tpu_custom_call.1} parent=43 // pred_check
          %p306 = pneg %p60
        $region46: #{tpu_custom_call.1} parent=43 // pred_check_branch
          %308 = sbr.rel (%p306) target = $region48
        $region47: #{tpu_custom_call.1} parent=43 // pred_region
          %309 = dma.done %s302, 64
        $region48: #{tpu_custom_call.1} parent=43 // pred_fallthru
          _
        // Predicated region
        $region49: #{tpu_custom_call.1} parent=43 // pred_check
          %p310 = pneg %p86
        $region50: #{tpu_custom_call.1} parent=43 // pred_check_branch
          %312 = sbr.rel (%p310) target = $region52
        $region51: #{tpu_custom_call.1} parent=43 // pred_region
          %313 = dma.done [#allocation7], 128
        $region52: #{tpu_custom_call.1} parent=43 // pred_fallthru
          _
        // Predicated region
        $region53: #{tpu_custom_call.1} parent=43 // pred_check
          %p314 = pneg %p107
        $region54: #{tpu_custom_call.1} parent=43 // pred_check_branch
          %316 = sbr.rel (%p314) target = $region56
        $region55: #{tpu_custom_call.1} parent=43 // pred_region
          %317 = dma.done [#allocation7], 256
        $region56: #{tpu_custom_call.1} parent=43 // pred_fallthru
          _
        // Predicated region
        $region57: #{tpu_custom_call.1} parent=43 // pred_check
          %p318 = pneg %p128
        $region58: #{tpu_custom_call.1} parent=43 // pred_check_branch
          %320 = sbr.rel (%p318) target = $region60
        $region59: #{tpu_custom_call.1} parent=43 // pred_region
          %321 = dma.done [#allocation10], 256
        $region60: #{tpu_custom_call.1} parent=43 // pred_fallthru
          _
        // Predicated region
        $region61: #{tpu_custom_call.1} parent=43 // pred_check
          %p322 = pneg %p149
        $region62: #{tpu_custom_call.1} parent=43 // pred_check_branch
          %324 = sbr.rel (%p322) target = $region64
        $region63: #{tpu_custom_call.1} parent=43 // pred_region
          %325 = dma.done [#allocation10], 256
        $region64: #{tpu_custom_call.1} parent=43 // pred_fallthru
          _
        %s326 = sand.u32 %s47, 1
        %s327 = scalar_lea.sflag [#allocation4], %s326
        %s328 = sand.u32 %s47, 1
        %s329 = smul.addr %s328, 4
        %s330 = scalar_lea.vmem [#allocation3], %s329
        %p331 = pneg %p60
        %p332 = pneg %p57
        %p333 = pneg %p86
        %p334 = pneg %p83
        %p335 = pneg %p107
        %p336 = pneg %p104
        %p337 = pneg %p128
        %p338 = pneg %p125
        %p339 = pneg %p149
        %p340 = pneg %p146
        %p341 = pneg %p170
        %p342 = pneg %p167
        %p343 = pneg %p198
        %p344 = pneg %p195
        %s345 = sand.u32 %s185, 1
        %s346 = scalar_lea.sflag [#allocation5], %s345
        %s347 = sand.u32 %s185, 1
        %s348 = smul.addr %s347, 8
        %s349 = scalar_lea.vmem [#allocation12], %s348
        %p351 = scmp.eq.s32.totalorder %s30, 0
        // Predicated region
        $region65: #{tpu_custom_call.1} parent=43 // pred_check
          %p352 = pneg %p351
        $region66: #{tpu_custom_call.1} parent=43 // pred_check_branch
          %354 = sbr.rel (%p352) target = $region68
        $region67: #{tpu_custom_call.1} parent=43 // pred_region
          %v355 = vld [vmem:[#allocation6] sm:$0xf]
          %v356 = vld [vmem:[#allocation6 + $0x4] sm:$0xf]
          %v357 = vld [vmem:[#allocation9] sm:$0xf]
          %v358 = vld [vmem:[#allocation9 + $0x4] sm:$0xf]
          %v359 = vld [vmem:[#allocation9 + $0x8] sm:$0xf]
          %v360 = vld [vmem:[#allocation9 + $0xc] sm:$0xf]
          %v363 = vunpack.c.l.b16 %v355
          %v364 = vunpack.c.l.b16 %v356
          %v365 = vpack.c.b16 %v364, %v363
          %v370 = vunpack.c.l.b16 %v357
          %v371 = vunpack.c.l.b16 %v358
          %v372 = vunpack.c.l.b16 %v359
          %v373 = vunpack.c.l.b16 %v360
          %v374 = vpack.c.b16 %v371, %v370
          %v375 = vpack.c.b16 %v373, %v372
          %vm378 = vcmask 261120
          %v380 = vsel %vm378, %v365, 0
          %382 = vmatprep.subr.bf16.mxu0 0
          %383 = vmatpush1.bf16.msra.mxu0 0
          %384 = vmatprep.subr.bf16.mxu0 0
          %385 = vmatpush1.bf16.msra.mxu0 0
          %386 = vmatprep.subr.bf16.mxu0 0
          %387 = vmatpush1.bf16.msra.mxu0 0
          %388 = vmatprep.subr.bf16.mxu0 0
          %389 = vmatpush1.bf16.msra.mxu0 0
          %390 = vmatprep.subr.bf16.mxu0 0
          %391 = vmatpush1.bf16.msra.mxu0 0
          %392 = vmatprep.subr.bf16.mxu0 0
          %393 = vmatpush1.bf16.msra.mxu0 0
          %394 = vmatprep.subr.bf16.mxu0 0
          %395 = vmatpush1.bf16.msra.mxu0 %v375
          %396 = vmatprep.subr.bf16.mxu0 0
          %397 = vmatpush1.bf16.msra.mxu0 %v374
          %398 = vmatprep.subr.bf16.mxu0 0
          %399 = vmatpush2.bf16.msra.mxu0 0
          %400 = vmatprep.subr.bf16.mxu0 0
          %401 = vmatpush2.bf16.msra.mxu0 0
          %402 = vmatprep.subr.bf16.mxu0 0
          %403 = vmatpush2.bf16.msra.mxu0 0
          %404 = vmatprep.subr.bf16.mxu0 0
          %405 = vmatpush2.bf16.msra.mxu0 0
          %406 = vmatprep.subr.bf16.mxu0 0
          %407 = vmatpush2.bf16.msra.mxu0 0
          %408 = vmatprep.subr.bf16.mxu0 0
          %409 = vmatpush2.bf16.msra.mxu0 0
          %410 = vmatprep.subr.bf16.mxu0 0
          %411 = vmatpush2.bf16.msra.mxu0 0
          %412 = vmatprep.subr.bf16.mxu0 0
          %413 = vmatpush2.bf16.msra.mxu0 0
          %414 = vmatprep.mubr.bf16.mxu0 0
          %415 = vmatmul.mubr.bf16.gmra.mxu0 %v380
          %v416 = vpop.f32.mrf.mxu0
          %v417 = vadd.f32 0.0, %v416
          %v418 = vpop.f32.mrf.mxu0
          %v419 = vpop.f32.mrf.mxu0
          %v420 = vadd.f32 0.0, %v419
          %v421 = vpop.f32.mrf.mxu0
          %422 = vdwg.mxu0
          %v423 = vpack.c.bf16 %v420, %v417
          %v425 = vunpack.c.l.b16 %v423
          %v426 = vunpack.c.h.b16 %v423
          %v427 = vpack.c.b16 %v425, %v425
          %v428 = vpack.c.b16 %v426, %v426
          %vm431 = vcmask 519168
          %432 = vst.msk [vmem:[#allocation2] sm:$0xf] %vm431, %v427
          %433 = vst.msk [vmem:[#allocation2 + $0x4] sm:$0xf] %vm431, %v428
        $region68: #{tpu_custom_call.1} parent=43 // pred_fallthru
          _
        %v434 = vld [vmem:[%s305] sm:$0xf]
        %v435 = vld [vmem:[#allocation8] sm:$0xf]
        %v436 = vld [vmem:[#allocation8 + $0x4] sm:$0xf]
        %v437 = vld [vmem:[#allocation8 + $0x8] sm:$0xf]
        %v438 = vld [vmem:[#allocation8 + $0xc] sm:$0xf]
        %v443 = vunpack.c.l.b16 %v435
        %v444 = vunpack.c.l.b16 %v436
        %v445 = vunpack.c.l.b16 %v437
        %v446 = vunpack.c.l.b16 %v438
        %v447 = vpack.c.b16 %v444, %v443
        %v448 = vpack.c.b16 %v446, %v445
        %vm451 = vcmask 261120
        %v453 = vsel %vm451, %v434, 0
        %455 = vmatprep.subr.bf16.mxu0 0
        %456 = vmatpush1.bf16.msra.mxu0 0
        %457 = vmatprep.subr.bf16.mxu0 0
        %458 = vmatpush1.bf16.msra.mxu0 0
        %459 = vmatprep.subr.bf16.mxu0 0
        %460 = vmatpush1.bf16.msra.mxu0 0
        %461 = vmatprep.subr.bf16.mxu0 0
        %462 = vmatpush1.bf16.msra.mxu0 0
        %463 = vmatprep.subr.bf16.mxu0 0
        %464 = vmatpush1.bf16.msra.mxu0 0
        %465 = vmatprep.subr.bf16.mxu0 0
        %466 = vmatpush1.bf16.msra.mxu0 0
        %467 = vmatprep.subr.bf16.mxu0 0
        %468 = vmatpush1.bf16.msra.mxu0 %v448
        %469 = vmatprep.subr.bf16.mxu0 0
        %470 = vmatpush1.bf16.msra.mxu0 %v447
        %471 = vmatprep.subr.bf16.mxu0 0
        %472 = vmatpush2.bf16.msra.mxu0 0
        %473 = vmatprep.subr.bf16.mxu0 0
        %474 = vmatpush2.bf16.msra.mxu0 0
        %475 = vmatprep.subr.bf16.mxu0 0
        %476 = vmatpush2.bf16.msra.mxu0 0
        %477 = vmatprep.subr.bf16.mxu0 0
        %478 = vmatpush2.bf16.msra.mxu0 0
        %479 = vmatprep.subr.bf16.mxu0 0
        %480 = vmatpush2.bf16.msra.mxu0 0
        %481 = vmatprep.subr.bf16.mxu0 0
        %482 = vmatpush2.bf16.msra.mxu0 0
        %483 = vmatprep.subr.bf16.mxu0 0
        %484 = vmatpush2.bf16.msra.mxu0 0
        %485 = vmatprep.subr.bf16.mxu0 0
        %486 = vmatpush2.bf16.msra.mxu0 0
        %487 = vmatprep.mubr.bf16.mxu0 0
        %488 = vmatmul.mubr.bf16.gmra.mxu0 %v453
        %v489 = vpop.f32.mrf.mxu0
        %v490 = vadd.f32 0.0, %v489
        %v491 = vpop.f32.mrf.mxu0
        %v492 = vpop.f32.mrf.mxu0
        %v493 = vpop.f32.mrf.mxu0
        %494 = vdwg.mxu0
        %v495 = vpack.c.bf16 %v490, %v490
        %v496 = vld [vmem:[%s5] sm:$0x1]
        %v497 = vld [vmem:[#allocation2] sm:$0xf]
        %v498 = vld [vmem:[#allocation2 + $0x4] sm:$0xf]
        %v501 = vunpack.c.l.b16 %v497
        %v502 = vunpack.c.l.b16 %v498
        %v503 = vpack.c.b16 %v502, %v501
        %vm504 = vcmask 64512
        %v506 = vsel %vm504, %v495, 0
        %v509 = vsel %vm504, %v503, 0
        %511 = vmatprep.subr.bf16.mxu0 0
        %512 = vmatpush1.bf16.xpose.msra.mxu0 0
        %513 = vmatprep.subr.bf16.mxu0 0
        %514 = vmatpush1.bf16.xpose.msra.mxu0 0
        %515 = vmatprep.subr.bf16.mxu0 0
        %516 = vmatpush1.bf16.xpose.msra.mxu0 0
        %517 = vmatprep.subr.bf16.mxu0 0
        %518 = vmatpush1.bf16.xpose.msra.mxu0 0
        %519 = vmatprep.subr.bf16.mxu0 0
        %520 = vmatpush1.bf16.xpose.msra.mxu0 0
        %521 = vmatprep.subr.bf16.mxu0 0
        %522 = vmatpush1.bf16.xpose.msra.mxu0 0
        %523 = vmatprep.subr.bf16.mxu0 0
        %524 = vmatpush1.bf16.xpose.msra.mxu0 0
        %525 = vmatprep.subr.bf16.mxu0 0
        %526 = vmatpush1.bf16.xpose.msra.mxu0 %v509
        %527 = vmatprep.subr.bf16.mxu0 0
        %528 = vmatpush2.bf16.xpose.msra.mxu0 0
        %529 = vmatprep.subr.bf16.mxu0 0
        %530 = vmatpush2.bf16.xpose.msra.mxu0 0
        %531 = vmatprep.subr.bf16.mxu0 0
        %532 = vmatpush2.bf16.xpose.msra.mxu0 0
        %533 = vmatprep.subr.bf16.mxu0 0
        %534 = vmatpush2.bf16.xpose.msra.mxu0 0
        %535 = vmatprep.subr.bf16.mxu0 0
        %536 = vmatpush2.bf16.xpose.msra.mxu0 0
        %537 = vmatprep.subr.bf16.mxu0 0
        %538 = vmatpush2.bf16.xpose.msra.mxu0 0
        %539 = vmatprep.subr.bf16.mxu0 0
        %540 = vmatpush2.bf16.xpose.msra.mxu0 0
        %541 = vmatprep.subr.bf16.mxu0 0
        %542 = vmatpush2.bf16.xpose.msra.mxu0 0
        %543 = vmatprep.mubr.bf16.mxu0 0
        %544 = vmatmul.mubr.bf16.gmra.mxu0 %v506
        %v545 = vpop.f32.mrf.mxu0
        %v546 = vadd.f32 0.0, %v545
        %v547 = vpop.f32.mrf.mxu0
        %v548 = vpop.f32.mrf.mxu0
        %v549 = vpop.f32.mrf.mxu0
        %550 = vdwg.mxu0
        %vm551 = vcmask 130048
        %v552 = vsel %vm551, %v546, -inf
        %553 = vmax.xlane.f32.xlu0 %v552
        %v554 = vpop.xlane.xlu0 %553
        %v555 = vsub.f32 -inf, %v554
        %v556 = vmul.f32 %v555, 1.442695
        %v557 = vpow.pop %v556
        %v558 = vsub.f32 %v546, %v554
        %v559 = vmul.f32 %v558, 1.442695
        %v560 = vpow.pop %v559
        %v561 = vmul.f32 %v557, 0.0
        %v562 = vsel %vm551, %v560, 0.0
        %563 = vadd.xlane.f32.xlu0 %v562
        %v564 = vpop.xlane.xlu0 %563
        %v565 = vadd.f32 %v561, %v564
        %v566 = vpack.c.bf16 %v560, %v560
        %567 = vrot.lane.b32.xlu0 %v503, 96
        %v568 = vpop.permute.xlu0 %567
        %v571 = vsel %vm551, %v566, 0
        %573 = vmatprep.subr.bf16.mxu0 0
        %574 = vmatpush1.bf16.msra.mxu0 0
        %575 = vmatprep.subr.bf16.mxu0 0
        %576 = vmatpush1.bf16.msra.mxu0 0
        %577 = vmatprep.subr.bf16.mxu0 0
        %578 = vmatpush1.bf16.msra.mxu0 0
        %579 = vmatprep.subr.bf16.mxu0 0
        %580 = vmatpush1.bf16.msra.mxu0 0
        %581 = vmatprep.subr.bf16.mxu0 0
        %582 = vmatpush1.bf16.msra.mxu0 0
        %583 = vmatprep.subr.bf16.mxu0 0
        %584 = vmatpush1.bf16.msra.mxu0 0
        %585 = vmatprep.subr.bf16.mxu0 0
        %586 = vmatpush1.bf16.msra.mxu0 0
        %587 = vmatprep.subr.bf16.mxu0 0
        %588 = vmatpush1.bf16.msra.mxu0 %v568
        %589 = vmatprep.subr.bf16.mxu0 0
        %590 = vmatpush2.bf16.msra.mxu0 0
        %591 = vmatprep.subr.bf16.mxu0 0
        %592 = vmatpush2.bf16.msra.mxu0 0
        %593 = vmatprep.subr.bf16.mxu0 0
        %594 = vmatpush2.bf16.msra.mxu0 0
        %595 = vmatprep.subr.bf16.mxu0 0
        %596 = vmatpush2.bf16.msra.mxu0 0
        %597 = vmatprep.subr.bf16.mxu0 0
        %598 = vmatpush2.bf16.msra.mxu0 0
        %599 = vmatprep.subr.bf16.mxu0 0
        %600 = vmatpush2.bf16.msra.mxu0 0
        %601 = vmatprep.subr.bf16.mxu0 0
        %602 = vmatpush2.bf16.msra.mxu0 0
        %603 = vmatprep.subr.bf16.mxu0 0
        %604 = vmatpush2.bf16.msra.mxu0 0
        %605 = vmatprep.mubr.bf16.mxu0 0
        %606 = vmatmul.mubr.bf16.gmra.mxu0 %v571
        %v607 = vpop.f32.mrf.mxu0
        %v608 = vadd.f32 0.0, %v607
        %v609 = vpop.f32.mrf.mxu0
        %v610 = vpop.f32.mrf.mxu0
        %v611 = vpop.f32.mrf.mxu0
        %612 = vdwg.mxu0
        %v613 = vadd.f32 %v561, %v608
        %v614 = vrcp.pop %v565
        %v615 = vmul.f32 %v613, %v614
        %v616 = vpack.c.bf16 %v615, %v615
        %v617 = vld [vmem:[#allocation11] sm:$0xf]
        %619 = vrot.lane.b32.xlu0 %v495, 120
        %v620 = vpop.permute.xlu0 %619
        %621 = vrot.lane.b32.xlu0 %v503, 120
        %v622 = vpop.permute.xlu0 %621
        %v624 = vsel %vm504, %v620, 0
        %v627 = vsel %vm504, %v622, 0
        %629 = vmatprep.subr.bf16.mxu0 0
        %630 = vmatpush1.bf16.xpose.msra.mxu0 0
        %631 = vmatprep.subr.bf16.mxu0 0
        %632 = vmatpush1.bf16.xpose.msra.mxu0 0
        %633 = vmatprep.subr.bf16.mxu0 0
        %634 = vmatpush1.bf16.xpose.msra.mxu0 0
        %635 = vmatprep.subr.bf16.mxu0 0
        %636 = vmatpush1.bf16.xpose.msra.mxu0 0
        %637 = vmatprep.subr.bf16.mxu0 0
        %638 = vmatpush1.bf16.xpose.msra.mxu0 0
        %639 = vmatprep.subr.bf16.mxu0 0
        %640 = vmatpush1.bf16.xpose.msra.mxu0 0
        %641 = vmatprep.subr.bf16.mxu0 0
        %642 = vmatpush1.bf16.xpose.msra.mxu0 0
        %643 = vmatprep.subr.bf16.mxu0 0
        %644 = vmatpush1.bf16.xpose.msra.mxu0 %v627
        %645 = vmatprep.subr.bf16.mxu0 0
        %646 = vmatpush2.bf16.xpose.msra.mxu0 0
        %647 = vmatprep.subr.bf16.mxu0 0
        %648 = vmatpush2.bf16.xpose.msra.mxu0 0
        %649 = vmatprep.subr.bf16.mxu0 0
        %650 = vmatpush2.bf16.xpose.msra.mxu0 0
        %651 = vmatprep.subr.bf16.mxu0 0
        %652 = vmatpush2.bf16.xpose.msra.mxu0 0
        %653 = vmatprep.subr.bf16.mxu0 0
        %654 = vmatpush2.bf16.xpose.msra.mxu0 0
        %655 = vmatprep.subr.bf16.mxu0 0
        %656 = vmatpush2.bf16.xpose.msra.mxu0 0
        %657 = vmatprep.subr.bf16.mxu0 0
        %658 = vmatpush2.bf16.xpose.msra.mxu0 0
        %659 = vmatprep.subr.bf16.mxu0 0
        %660 = vmatpush2.bf16.xpose.msra.mxu0 0
        %661 = vmatprep.mubr.bf16.mxu0 0
        %662 = vmatmul.mubr.bf16.gmra.mxu0 %v624
        %v663 = vpop.f32.mrf.mxu0
        %v664 = vadd.f32 0.0, %v663
        %v665 = vpop.f32.mrf.mxu0
        %v666 = vpop.f32.mrf.mxu0
        %v667 = vpop.f32.mrf.mxu0
        %668 = vdwg.mxu0
        %v669 = vsel %vm551, %v664, -inf
        %670 = vmax.xlane.f32.xlu0 %v669
        %v671 = vpop.xlane.xlu0 %670
        %v672 = vsub.f32 -inf, %v671
        %v673 = vmul.f32 %v672, 1.442695
        %v674 = vpow.pop %v673
        %v675 = vsub.f32 %v664, %v671
        %v676 = vmul.f32 %v675, 1.442695
        %v677 = vpow.pop %v676
        %v678 = vmul.f32 %v674, 0.0
        %v679 = vsel %vm551, %v677, 0.0
        %680 = vadd.xlane.f32.xlu0 %v679
        %v681 = vpop.xlane.xlu0 %680
        %v682 = vadd.f32 %v678, %v681
        %v683 = vpack.c.bf16 %v677, %v677
        %684 = vrot.lane.b32.xlu0 %v503, 88
        %v685 = vpop.permute.xlu0 %684
        %v688 = vsel %vm551, %v683, 0
        %690 = vmatprep.subr.bf16.mxu0 0
        %691 = vmatpush1.bf16.msra.mxu0 0
        %692 = vmatprep.subr.bf16.mxu0 0
        %693 = vmatpush1.bf16.msra.mxu0 0
        %694 = vmatprep.subr.bf16.mxu0 0
        %695 = vmatpush1.bf16.msra.mxu0 0
        %696 = vmatprep.subr.bf16.mxu0 0
        %697 = vmatpush1.bf16.msra.mxu0 0
        %698 = vmatprep.subr.bf16.mxu0 0
        %699 = vmatpush1.bf16.msra.mxu0 0
        %700 = vmatprep.subr.bf16.mxu0 0
        %701 = vmatpush1.bf16.msra.mxu0 0
        %702 = vmatprep.subr.bf16.mxu0 0
        %703 = vmatpush1.bf16.msra.mxu0 0
        %704 = vmatprep.subr.bf16.mxu0 0
        %705 = vmatpush1.bf16.msra.mxu0 %v685
        %706 = vmatprep.subr.bf16.mxu0 0
        %707 = vmatpush2.bf16.msra.mxu0 0
        %708 = vmatprep.subr.bf16.mxu0 0
        %709 = vmatpush2.bf16.msra.mxu0 0
        %710 = vmatprep.subr.bf16.mxu0 0
        %711 = vmatpush2.bf16.msra.mxu0 0
        %712 = vmatprep.subr.bf16.mxu0 0
        %713 = vmatpush2.bf16.msra.mxu0 0
        %714 = vmatprep.subr.bf16.mxu0 0
        %715 = vmatpush2.bf16.msra.mxu0 0
        %716 = vmatprep.subr.bf16.mxu0 0
        %717 = vmatpush2.bf16.msra.mxu0 0
        %718 = vmatprep.subr.bf16.mxu0 0
        %719 = vmatpush2.bf16.msra.mxu0 0
        %720 = vmatprep.subr.bf16.mxu0 0
        %721 = vmatpush2.bf16.msra.mxu0 0
        %722 = vmatprep.mubr.bf16.mxu0 0
        %723 = vmatmul.mubr.bf16.gmra.mxu0 %v688
        %v724 = vpop.f32.mrf.mxu0
        %v725 = vadd.f32 0.0, %v724
        %v726 = vpop.f32.mrf.mxu0
        %v727 = vpop.f32.mrf.mxu0
        %v728 = vpop.f32.mrf.mxu0
        %729 = vdwg.mxu0
        %v730 = vadd.f32 %v678, %v725
        %v731 = vrcp.pop %v682
        %v732 = vmul.f32 %v730, %v731
        %v733 = vpack.c.bf16 %v732, %v732
        %v734 = vld [vmem:[#allocation11 + $0x4] sm:$0xf]
        %v736 = vsel %vm504, %v733, 0
        %vm738 = vcmask 1043456
        %v740 = vsel %vm738, %v734, 0
        %742 = vmatprep.subr.bf16.mxu0 0
        %743 = vmatpush1.bf16.msra.mxu0 0
        %744 = vmatprep.subr.bf16.mxu0 0
        %745 = vmatpush1.bf16.msra.mxu0 0
        %746 = vmatprep.subr.bf16.mxu0 0
        %747 = vmatpush1.bf16.msra.mxu0 0
        %748 = vmatprep.subr.bf16.mxu0 0
        %749 = vmatpush1.bf16.msra.mxu0 0
        %750 = vmatprep.subr.bf16.mxu0 0
        %751 = vmatpush1.bf16.msra.mxu0 0
        %752 = vmatprep.subr.bf16.mxu0 0
        %753 = vmatpush1.bf16.msra.mxu0 0
        %754 = vmatprep.subr.bf16.mxu0 0
        %755 = vmatpush1.bf16.msra.mxu0 0
        %756 = vmatprep.subr.bf16.mxu0 0
        %757 = vmatpush1.bf16.msra.mxu0 %v740
        %758 = vmatprep.subr.bf16.mxu0 0
        %759 = vmatpush2.bf16.msra.mxu0 0
        %760 = vmatprep.subr.bf16.mxu0 0
        %761 = vmatpush2.bf16.msra.mxu0 0
        %762 = vmatprep.subr.bf16.mxu0 0
        %763 = vmatpush2.bf16.msra.mxu0 0
        %764 = vmatprep.subr.bf16.mxu0 0
        %765 = vmatpush2.bf16.msra.mxu0 0
        %766 = vmatprep.subr.bf16.mxu0 0
        %767 = vmatpush2.bf16.msra.mxu0 0
        %768 = vmatprep.subr.bf16.mxu0 0
        %769 = vmatpush2.bf16.msra.mxu0 0
        %770 = vmatprep.subr.bf16.mxu0 0
        %771 = vmatpush2.bf16.msra.mxu0 0
        %772 = vmatprep.subr.bf16.mxu0 0
        %773 = vmatpush2.bf16.msra.mxu0 0
        %774 = vmatprep.mubr.bf16.mxu0 0
        %775 = vmatmul.mubr.bf16.gmra.mxu0 %v736
        %v776 = vpop.f32.mrf.mxu0
        %v777 = vadd.f32 0.0, %v776
        %v778 = vpop.f32.mrf.mxu0
        %v779 = vpop.f32.mrf.mxu0
        %v780 = vpop.f32.mrf.mxu0
        %781 = vdwg.mxu0
        %v783 = vsel %vm504, %v616, 0
        %v786 = vsel %vm738, %v617, 0
        %788 = vmatprep.subr.bf16.mxu0 0
        %789 = vmatpush1.bf16.msra.mxu0 0
        %790 = vmatprep.subr.bf16.mxu0 0
        %791 = vmatpush1.bf16.msra.mxu0 0
        %792 = vmatprep.subr.bf16.mxu0 0
        %793 = vmatpush1.bf16.msra.mxu0 0
        %794 = vmatprep.subr.bf16.mxu0 0
        %795 = vmatpush1.bf16.msra.mxu0 0
        %796 = vmatprep.subr.bf16.mxu0 0
        %797 = vmatpush1.bf16.msra.mxu0 0
        %798 = vmatprep.subr.bf16.mxu0 0
        %799 = vmatpush1.bf16.msra.mxu0 0
        %800 = vmatprep.subr.bf16.mxu0 0
        %801 = vmatpush1.bf16.msra.mxu0 0
        %802 = vmatprep.subr.bf16.mxu0 0
        %803 = vmatpush1.bf16.msra.mxu0 %v786
        %804 = vmatprep.subr.bf16.mxu0 0
        %805 = vmatpush2.bf16.msra.mxu0 0
        %806 = vmatprep.subr.bf16.mxu0 0
        %807 = vmatpush2.bf16.msra.mxu0 0
        %808 = vmatprep.subr.bf16.mxu0 0
        %809 = vmatpush2.bf16.msra.mxu0 0
        %810 = vmatprep.subr.bf16.mxu0 0
        %811 = vmatpush2.bf16.msra.mxu0 0
        %812 = vmatprep.subr.bf16.mxu0 0
        %813 = vmatpush2.bf16.msra.mxu0 0
        %814 = vmatprep.subr.bf16.mxu0 0
        %815 = vmatpush2.bf16.msra.mxu0 0
        %816 = vmatprep.subr.bf16.mxu0 0
        %817 = vmatpush2.bf16.msra.mxu0 0
        %818 = vmatprep.subr.bf16.mxu0 0
        %819 = vmatpush2.bf16.msra.mxu0 0
        %820 = vmatprep.mubr.bf16.mxu0 0
        %821 = vmatmul.mubr.bf16.gmra.mxu0 %v783
        %v822 = vpop.f32.mrf.mxu0
        %v823 = vadd.f32 %v777, %v822
        %v824 = vpop.f32.mrf.mxu0
        %v825 = vpop.f32.mrf.mxu0
        %v826 = vpop.f32.mrf.mxu0
        %827 = vdwg.mxu0
        %828 = vrot.lane.b32.xlu0 %v495, 112
        %v829 = vpop.permute.xlu0 %828
        %830 = vrot.lane.b32.xlu0 %v503, 112
        %v831 = vpop.permute.xlu0 %830
        %v833 = vsel %vm504, %v829, 0
        %v836 = vsel %vm504, %v831, 0
        %838 = vmatprep.subr.bf16.mxu0 0
        %839 = vmatpush1.bf16.xpose.msra.mxu0 0
        %840 = vmatprep.subr.bf16.mxu0 0
        %841 = vmatpush1.bf16.xpose.msra.mxu0 0
        %842 = vmatprep.subr.bf16.mxu0 0
        %843 = vmatpush1.bf16.xpose.msra.mxu0 0
        %844 = vmatprep.subr.bf16.mxu0 0
        %845 = vmatpush1.bf16.xpose.msra.mxu0 0
        %846 = vmatprep.subr.bf16.mxu0 0
        %847 = vmatpush1.bf16.xpose.msra.mxu0 0
        %848 = vmatprep.subr.bf16.mxu0 0
        %849 = vmatpush1.bf16.xpose.msra.mxu0 0
        %850 = vmatprep.subr.bf16.mxu0 0
        %851 = vmatpush1.bf16.xpose.msra.mxu0 0
        %852 = vmatprep.subr.bf16.mxu0 0
        %853 = vmatpush1.bf16.xpose.msra.mxu0 %v836
        %854 = vmatprep.subr.bf16.mxu0 0
        %855 = vmatpush2.bf16.xpose.msra.mxu0 0
        %856 = vmatprep.subr.bf16.mxu0 0
        %857 = vmatpush2.bf16.xpose.msra.mxu0 0
        %858 = vmatprep.subr.bf16.mxu0 0
        %859 = vmatpush2.bf16.xpose.msra.mxu0 0
        %860 = vmatprep.subr.bf16.mxu0 0
        %861 = vmatpush2.bf16.xpose.msra.mxu0 0
        %862 = vmatprep.subr.bf16.mxu0 0
        %863 = vmatpush2.bf16.xpose.msra.mxu0 0
        %864 = vmatprep.subr.bf16.mxu0 0
        %865 = vmatpush2.bf16.xpose.msra.mxu0 0
        %866 = vmatprep.subr.bf16.mxu0 0
        %867 = vmatpush2.bf16.xpose.msra.mxu0 0
        %868 = vmatprep.subr.bf16.mxu0 0
        %869 = vmatpush2.bf16.xpose.msra.mxu0 0
        %870 = vmatprep.mubr.bf16.mxu0 0
        %871 = vmatmul.mubr.bf16.gmra.mxu0 %v833
        %v872 = vpop.f32.mrf.mxu0
        %v873 = vadd.f32 0.0, %v872
        %v874 = vpop.f32.mrf.mxu0
        %v875 = vpop.f32.mrf.mxu0
        %v876 = vpop.f32.mrf.mxu0
        %877 = vdwg.mxu0
        %v878 = vsel %vm551, %v873, -inf
        %879 = vmax.xlane.f32.xlu0 %v878
        %v880 = vpop.xlane.xlu0 %879
        %v881 = vsub.f32 -inf, %v880
        %v882 = vmul.f32 %v881, 1.442695
        %v883 = vpow.pop %v882
        %v884 = vsub.f32 %v873, %v880
        %v885 = vmul.f32 %v884, 1.442695
        %v886 = vpow.pop %v885
        %v887 = vmul.f32 %v883, 0.0
        %v888 = vsel %vm551, %v886, 0.0
        %889 = vadd.xlane.f32.xlu0 %v888
        %v890 = vpop.xlane.xlu0 %889
        %v891 = vadd.f32 %v887, %v890
        %v892 = vpack.c.bf16 %v886, %v886
        %893 = vrot.lane.b32.xlu0 %v503, 80
        %v894 = vpop.permute.xlu0 %893
        %v897 = vsel %vm551, %v892, 0
        %899 = vmatprep.subr.bf16.mxu0 0
        %900 = vmatpush1.bf16.msra.mxu0 0
        %901 = vmatprep.subr.bf16.mxu0 0
        %902 = vmatpush1.bf16.msra.mxu0 0
        %903 = vmatprep.subr.bf16.mxu0 0
        %904 = vmatpush1.bf16.msra.mxu0 0
        %905 = vmatprep.subr.bf16.mxu0 0
        %906 = vmatpush1.bf16.msra.mxu0 0
        %907 = vmatprep.subr.bf16.mxu0 0
        %908 = vmatpush1.bf16.msra.mxu0 0
        %909 = vmatprep.subr.bf16.mxu0 0
        %910 = vmatpush1.bf16.msra.mxu0 0
        %911 = vmatprep.subr.bf16.mxu0 0
        %912 = vmatpush1.bf16.msra.mxu0 0
        %913 = vmatprep.subr.bf16.mxu0 0
        %914 = vmatpush1.bf16.msra.mxu0 %v894
        %915 = vmatprep.subr.bf16.mxu0 0
        %916 = vmatpush2.bf16.msra.mxu0 0
        %917 = vmatprep.subr.bf16.mxu0 0
        %918 = vmatpush2.bf16.msra.mxu0 0
        %919 = vmatprep.subr.bf16.mxu0 0
        %920 = vmatpush2.bf16.msra.mxu0 0
        %921 = vmatprep.subr.bf16.mxu0 0
        %922 = vmatpush2.bf16.msra.mxu0 0
        %923 = vmatprep.subr.bf16.mxu0 0
        %924 = vmatpush2.bf16.msra.mxu0 0
        %925 = vmatprep.subr.bf16.mxu0 0
        %926 = vmatpush2.bf16.msra.mxu0 0
        %927 = vmatprep.subr.bf16.mxu0 0
        %928 = vmatpush2.bf16.msra.mxu0 0
        %929 = vmatprep.subr.bf16.mxu0 0
        %930 = vmatpush2.bf16.msra.mxu0 0
        %931 = vmatprep.mubr.bf16.mxu0 0
        %932 = vmatmul.mubr.bf16.gmra.mxu0 %v897
        %v933 = vpop.f32.mrf.mxu0
        %v934 = vadd.f32 0.0, %v933
        %v935 = vpop.f32.mrf.mxu0
        %v936 = vpop.f32.mrf.mxu0
        %v937 = vpop.f32.mrf.mxu0
        %938 = vdwg.mxu0
        %v939 = vadd.f32 %v887, %v934
        %v940 = vrcp.pop %v891
        %v941 = vmul.f32 %v939, %v940
        %v942 = vpack.c.bf16 %v941, %v941
        %v943 = vld [vmem:[#allocation11 + $0x8] sm:$0xf]
        %v945 = vsel %vm504, %v942, 0
        %v948 = vsel %vm738, %v943, 0
        %950 = vmatprep.subr.bf16.mxu0 0
        %951 = vmatpush1.bf16.msra.mxu0 0
        %952 = vmatprep.subr.bf16.mxu0 0
        %953 = vmatpush1.bf16.msra.mxu0 0
        %954 = vmatprep.subr.bf16.mxu0 0
        %955 = vmatpush1.bf16.msra.mxu0 0
        %956 = vmatprep.subr.bf16.mxu0 0
        %957 = vmatpush1.bf16.msra.mxu0 0
        %958 = vmatprep.subr.bf16.mxu0 0
        %959 = vmatpush1.bf16.msra.mxu0 0
        %960 = vmatprep.subr.bf16.mxu0 0
        %961 = vmatpush1.bf16.msra.mxu0 0
        %962 = vmatprep.subr.bf16.mxu0 0
        %963 = vmatpush1.bf16.msra.mxu0 0
        %964 = vmatprep.subr.bf16.mxu0 0
        %965 = vmatpush1.bf16.msra.mxu0 %v948
        %966 = vmatprep.subr.bf16.mxu0 0
        %967 = vmatpush2.bf16.msra.mxu0 0
        %968 = vmatprep.subr.bf16.mxu0 0
        %969 = vmatpush2.bf16.msra.mxu0 0
        %970 = vmatprep.subr.bf16.mxu0 0
        %971 = vmatpush2.bf16.msra.mxu0 0
        %972 = vmatprep.subr.bf16.mxu0 0
        %973 = vmatpush2.bf16.msra.mxu0 0
        %974 = vmatprep.subr.bf16.mxu0 0
        %975 = vmatpush2.bf16.msra.mxu0 0
        %976 = vmatprep.subr.bf16.mxu0 0
        %977 = vmatpush2.bf16.msra.mxu0 0
        %978 = vmatprep.subr.bf16.mxu0 0
        %979 = vmatpush2.bf16.msra.mxu0 0
        %980 = vmatprep.subr.bf16.mxu0 0
        %981 = vmatpush2.bf16.msra.mxu0 0
        %982 = vmatprep.mubr.bf16.mxu0 0
        %983 = vmatmul.mubr.bf16.gmra.mxu0 %v945
        %v984 = vpop.f32.mrf.mxu0
        %v985 = vadd.f32 0.0, %v984
        %v986 = vpop.f32.mrf.mxu0
        %v987 = vpop.f32.mrf.mxu0
        %v988 = vpop.f32.mrf.mxu0
        %989 = vdwg.mxu0
        %v990 = vadd.f32 %v823, %v985
        %991 = vrot.lane.b32.xlu0 %v495, 104
        %v992 = vpop.permute.xlu0 %991
        %993 = vrot.lane.b32.xlu0 %v503, 104
        %v994 = vpop.permute.xlu0 %993
        %v996 = vsel %vm504, %v992, 0
        %v999 = vsel %vm504, %v994, 0
        %1001 = vmatprep.subr.bf16.mxu0 0
        %1002 = vmatpush1.bf16.xpose.msra.mxu0 0
        %1003 = vmatprep.subr.bf16.mxu0 0
        %1004 = vmatpush1.bf16.xpose.msra.mxu0 0
        %1005 = vmatprep.subr.bf16.mxu0 0
        %1006 = vmatpush1.bf16.xpose.msra.mxu0 0
        %1007 = vmatprep.subr.bf16.mxu0 0
        %1008 = vmatpush1.bf16.xpose.msra.mxu0 0
        %1009 = vmatprep.subr.bf16.mxu0 0
        %1010 = vmatpush1.bf16.xpose.msra.mxu0 0
        %1011 = vmatprep.subr.bf16.mxu0 0
        %1012 = vmatpush1.bf16.xpose.msra.mxu0 0
        %1013 = vmatprep.subr.bf16.mxu0 0
        %1014 = vmatpush1.bf16.xpose.msra.mxu0 0
        %1015 = vmatprep.subr.bf16.mxu0 0
        %1016 = vmatpush1.bf16.xpose.msra.mxu0 %v999
        %1017 = vmatprep.subr.bf16.mxu0 0
        %1018 = vmatpush2.bf16.xpose.msra.mxu0 0
        %1019 = vmatprep.subr.bf16.mxu0 0
        %1020 = vmatpush2.bf16.xpose.msra.mxu0 0
        %1021 = vmatprep.subr.bf16.mxu0 0
        %1022 = vmatpush2.bf16.xpose.msra.mxu0 0
        %1023 = vmatprep.subr.bf16.mxu0 0
        %1024 = vmatpush2.bf16.xpose.msra.mxu0 0
        %1025 = vmatprep.subr.bf16.mxu0 0
        %1026 = vmatpush2.bf16.xpose.msra.mxu0 0
        %1027 = vmatprep.subr.bf16.mxu0 0
        %1028 = vmatpush2.bf16.xpose.msra.mxu0 0
        %1029 = vmatprep.subr.bf16.mxu0 0
        %1030 = vmatpush2.bf16.xpose.msra.mxu0 0
        %1031 = vmatprep.subr.bf16.mxu0 0
        %1032 = vmatpush2.bf16.xpose.msra.mxu0 0
        %1033 = vmatprep.mubr.bf16.mxu0 0
        %1034 = vmatmul.mubr.bf16.gmra.mxu0 %v996
        %v1035 = vpop.f32.mrf.mxu0
        %v1036 = vadd.f32 0.0, %v1035
        %v1037 = vpop.f32.mrf.mxu0
        %v1038 = vpop.f32.mrf.mxu0
        %v1039 = vpop.f32.mrf.mxu0
        %1040 = vdwg.mxu0
        %v1041 = vsel %vm551, %v1036, -inf
        %1042 = vmax.xlane.f32.xlu0 %v1041
        %v1043 = vpop.xlane.xlu0 %1042
        %v1044 = vsub.f32 -inf, %v1043
        %v1045 = vmul.f32 %v1044, 1.442695
        %v1046 = vpow.pop %v1045
        %v1047 = vsub.f32 %v1036, %v1043
        %v1048 = vmul.f32 %v1047, 1.442695
        %v1049 = vpow.pop %v1048
        %v1050 = vmul.f32 %v1046, 0.0
        %v1051 = vsel %vm551, %v1049, 0.0
        %1052 = vadd.xlane.f32.xlu0 %v1051
        %v1053 = vpop.xlane.xlu0 %1052
        %v1054 = vadd.f32 %v1050, %v1053
        %v1055 = vpack.c.bf16 %v1049, %v1049
        %1056 = vrot.lane.b32.xlu0 %v503, 72
        %v1057 = vpop.permute.xlu0 %1056
        %v1060 = vsel %vm551, %v1055, 0
        %1062 = vmatprep.subr.bf16.mxu0 0
        %1063 = vmatpush1.bf16.msra.mxu0 0
        %1064 = vmatprep.subr.bf16.mxu0 0
        %1065 = vmatpush1.bf16.msra.mxu0 0
        %1066 = vmatprep.subr.bf16.mxu0 0
        %1067 = vmatpush1.bf16.msra.mxu0 0
        %1068 = vmatprep.subr.bf16.mxu0 0
        %1069 = vmatpush1.bf16.msra.mxu0 0
        %1070 = vmatprep.subr.bf16.mxu0 0
        %1071 = vmatpush1.bf16.msra.mxu0 0
        %1072 = vmatprep.subr.bf16.mxu0 0
        %1073 = vmatpush1.bf16.msra.mxu0 0
        %1074 = vmatprep.subr.bf16.mxu0 0
        %1075 = vmatpush1.bf16.msra.mxu0 0
        %1076 = vmatprep.subr.bf16.mxu0 0
        %1077 = vmatpush1.bf16.msra.mxu0 %v1057
        %1078 = vmatprep.subr.bf16.mxu0 0
        %1079 = vmatpush2.bf16.msra.mxu0 0
        %1080 = vmatprep.subr.bf16.mxu0 0
        %1081 = vmatpush2.bf16.msra.mxu0 0
        %1082 = vmatprep.subr.bf16.mxu0 0
        %1083 = vmatpush2.bf16.msra.mxu0 0
        %1084 = vmatprep.subr.bf16.mxu0 0
        %1085 = vmatpush2.bf16.msra.mxu0 0
        %1086 = vmatprep.subr.bf16.mxu0 0
        %1087 = vmatpush2.bf16.msra.mxu0 0
        %1088 = vmatprep.subr.bf16.mxu0 0
        %1089 = vmatpush2.bf16.msra.mxu0 0
        %1090 = vmatprep.subr.bf16.mxu0 0
        %1091 = vmatpush2.bf16.msra.mxu0 0
        %1092 = vmatprep.subr.bf16.mxu0 0
        %1093 = vmatpush2.bf16.msra.mxu0 0
        %1094 = vmatprep.mubr.bf16.mxu0 0
        %1095 = vmatmul.mubr.bf16.gmra.mxu0 %v1060
        %v1096 = vpop.f32.mrf.mxu0
        %v1097 = vadd.f32 0.0, %v1096
        %v1098 = vpop.f32.mrf.mxu0
        %v1099 = vpop.f32.mrf.mxu0
        %v1100 = vpop.f32.mrf.mxu0
        %1101 = vdwg.mxu0
        %v1102 = vadd.f32 %v1050, %v1097
        %v1103 = vrcp.pop %v1054
        %v1104 = vmul.f32 %v1102, %v1103
        %v1105 = vpack.c.bf16 %v1104, %v1104
        %v1106 = vld [vmem:[#allocation11 + $0xc] sm:$0xf]
        %v1108 = vsel %vm504, %v1105, 0
        %v1111 = vsel %vm738, %v1106, 0
        %1113 = vmatprep.subr.bf16.mxu0 0
        %1114 = vmatpush1.bf16.msra.mxu0 0
        %1115 = vmatprep.subr.bf16.mxu0 0
        %1116 = vmatpush1.bf16.msra.mxu0 0
        %1117 = vmatprep.subr.bf16.mxu0 0
        %1118 = vmatpush1.bf16.msra.mxu0 0
        %1119 = vmatprep.subr.bf16.mxu0 0
        %1120 = vmatpush1.bf16.msra.mxu0 0
        %1121 = vmatprep.subr.bf16.mxu0 0
        %1122 = vmatpush1.bf16.msra.mxu0 0
        %1123 = vmatprep.subr.bf16.mxu0 0
        %1124 = vmatpush1.bf16.msra.mxu0 0
        %1125 = vmatprep.subr.bf16.mxu0 0
        %1126 = vmatpush1.bf16.msra.mxu0 0
        %1127 = vmatprep.subr.bf16.mxu0 0
        %1128 = vmatpush1.bf16.msra.mxu0 %v1111
        %1129 = vmatprep.subr.bf16.mxu0 0
        %1130 = vmatpush2.bf16.msra.mxu0 0
        %1131 = vmatprep.subr.bf16.mxu0 0
        %1132 = vmatpush2.bf16.msra.mxu0 0
        %1133 = vmatprep.subr.bf16.mxu0 0
        %1134 = vmatpush2.bf16.msra.mxu0 0
        %1135 = vmatprep.subr.bf16.mxu0 0
        %1136 = vmatpush2.bf16.msra.mxu0 0
        %1137 = vmatprep.subr.bf16.mxu0 0
        %1138 = vmatpush2.bf16.msra.mxu0 0
        %1139 = vmatprep.subr.bf16.mxu0 0
        %1140 = vmatpush2.bf16.msra.mxu0 0
        %1141 = vmatprep.subr.bf16.mxu0 0
        %1142 = vmatpush2.bf16.msra.mxu0 0
        %1143 = vmatprep.subr.bf16.mxu0 0
        %1144 = vmatpush2.bf16.msra.mxu0 0
        %1145 = vmatprep.mubr.bf16.mxu0 0
        %1146 = vmatmul.mubr.bf16.gmra.mxu0 %v1108
        %v1147 = vpop.f32.mrf.mxu0
        %v1148 = vadd.f32 0.0, %v1147
        %v1149 = vpop.f32.mrf.mxu0
        %v1150 = vpop.f32.mrf.mxu0
        %v1151 = vpop.f32.mrf.mxu0
        %1152 = vdwg.mxu0
        %v1153 = vadd.f32 %v990, %v1148
        %v1155 = vlaneseq
        %v1156 = vshrl.u32 %v1155, 7
        %v1157 = vsub.s32 0, %v1156
        %v1158 = vrot.slane %v496, %v1157
        %v1160 = vadd.f32 %v1153, %v1158
        %1161 = vst.msk [vmem:[%s349] sm:$0xff] %vm451, %v1160
        %s1162 = sand.u32 %s185, 1
        %s1163 = scalar_lea.sflag [#allocation5], %s1162
        %s1164 = sand.u32 %s185, 1
        %s1165 = smul.addr %s1164, 8
        %s1166 = scalar_lea.vmem [#allocation12], %s1165
        // Predicated region
        $region69: #{tpu_custom_call.1} parent=43 // pred_check
          %p1167 = pneg %p195
        $region70: #{tpu_custom_call.1} parent=43 // pred_check_branch
          %1169 = sbr.rel (%p1167) target = $region72
        $region71: #{tpu_custom_call.1} parent=43 // pred_region
          %s1171 = ssub.s32 128, 128
          %1172 = vsyncadd %s1163, %s1171
          %s1173 = sadd.s32 %s30, %s29
          %s1174 = smul.addr %s1173, 128
          %s1175 = scalar_lea.hbm %s6, %s1174
          %s1177 = sshll.u32 %s1166, 4
          %s1178 = int_to_ptr.vmem [resolvable:$true] %s1177
          %1180 = dma.vmem_to_hbm [thread:$0]  %s1178, 128, %s1175, %s1163
        $region72: #{tpu_custom_call.1} parent=43 // pred_fallthru
          _
      $region44: #{tpu_custom_call.1} parent=5 // pred_fallthru
        _
      %p1181 = scmp.le.s32.totalorder 2, %s20
      // Predicated region
      $region73: #{tpu_custom_call.1} parent=5 // pred_check
        %p1182 = pneg %p1181
      $region74: #{tpu_custom_call.1} parent=5 // pred_check_branch
        %1184 = sbr.rel (%p1182) target = $region76
      $region75: #{tpu_custom_call.1} parent=5 // pred_region
        %s1185 = ssub.s32 %s20, 2
        // Predicated region
        $region77: #{tpu_custom_call.1} parent=75 // pred_check
          %p1186 = pneg %p201
        $region78: #{tpu_custom_call.1} parent=75 // pred_check_branch
          %1188 = sbr.rel (%p1186) target = $region80
        $region79: #{tpu_custom_call.1} parent=75 // pred_region
          %s1189 = sand.u32 %s186, 1
          %s1190 = scalar_lea.sflag [#allocation5], %s1189
          %s1191 = sand.u32 %s186, 1
          %s1192 = smul.addr %s1191, 8
          %s1193 = scalar_lea.vmem [#allocation12], %s1192
          %1194 = dma.done %s1190, 128
        $region80: #{tpu_custom_call.1} parent=75 // pred_fallthru
          _
      $region76: #{tpu_custom_call.1} parent=5 // pred_fallthru
        _
    $region6: #{tpu_custom_call.1} parent=1 // loop_footer
      %s24 = sadd.s32 1, %s20
    $region7: #{tpu_custom_call.1} parent=1 // loop_footer_branch
      %19 = sbr.rel target = $region3
    $region8: #{tpu_custom_call.1} parent=1 // loop_exit
      _
    %1195 = vsyncpa [#allocation4], 1
    %s1196 = scalar_lea.sflag [#allocation4], 1
    %1197 = vsyncpa %s1196, 1
    %1198 = vsyncpa [#allocation7], 1
    %1199 = vsyncpa [#allocation10], 1
    %1200 = vsyncpa [#allocation5], 1
    %s1201 = scalar_lea.sflag [#allocation5], 1
    %1202 = vsyncpa %s1201, 1

</llo_original>
